<compile_context>
chip_gen: v7x
topology: tpu7x:2x2x1
jax: 0.10.0
libtpu: 0.0.40
codegen_flags: <defaults>
</compile_context>

<pallas_src>
import functools

import jax
import jax.numpy as jnp
from jax.experimental import pallas as pl
from jax.experimental.pallas import tpu as pltpu


# Padded (lane-dense) sizes — everything stays inside one (128,128)-aligned tile set.
N_PAD = 128   # nodes (dst rows / src lanes)
E_PAD = 128   # edges per score graph (lane axis of the score outputs)
F_PAD = 128   # feature axis (holds F_out cols + el col + er col + zero padding)


# ---------------------------------------------------------------------------
# Fused kernel: per-relation GATConv + sum aggregation + u_dot_v scoring
# ---------------------------------------------------------------------------
def _fused_kernel(f_out,
                  x_ref, w_ref, b_ref, adj_ref,
                  pu_ref, pv_ref, nu_ref, nv_ref,
                  pos_ref, neg_ref,
                  h_acc):
    r = pl.program_id(0)

    # ---- GATConv for relation r (bf16 MXU feed, f32 accumulation) ----------
    # w_ref = [W | W a_l^T | W a_r^T | 0...]  -> el/er come out of the matmul.
    feat_ext = jnp.dot(x_ref[...], w_ref[...],
                       preferred_element_type=jnp.float32)         # (N_PAD, F_PAD) f32

    el = feat_ext[:, f_out:f_out + 1]                               # (N_PAD, 1)
    er = feat_ext[:, f_out + 1:f_out + 2]                           # (N_PAD, 1)

    # e[d, s] = LeakyReLU(el[s] + er[d], 0.2)
    e = er + jnp.transpose(el)                                      # (dst, src)
    e = jnp.where(e > 0, e, 0.2 * e)

    # Masked softmax over incoming edges of each dst (f32 logits -> -1e30 safe).
    adj = adj_ref[...].astype(jnp.float32) > 0.0                    # int8 -> bool mask
    masked = jnp.where(adj, e, jnp.float32(-1e30))
    m = jnp.max(masked, axis=-1, keepdims=True)
    p = jnp.where(adj, jnp.exp(masked - m), 0.0)
    denom = jnp.sum(p, axis=-1, keepdims=True)
    alpha = p * pl.reciprocal(jnp.maximum(denom, jnp.float32(1e-30)), approx=True)

    # Zero the el/er/padding columns so only the real F_out features aggregate.
    col = jax.lax.broadcasted_iota(jnp.int32, (1, F_PAD), 1)
    fmask = (col < f_out).astype(jnp.float32)
    feat = feat_ext * fmask                                         # (N_PAD, F_PAD)

    rst = jnp.dot(alpha.astype(jnp.bfloat16), feat.astype(jnp.bfloat16),
                  preferred_element_type=jnp.float32)               # (N_PAD, F_PAD)
    h_r = jnp.maximum(rst + b_ref[...], 0.0)                        # bias + relu

    # ---- HeteroGraphConv "sum" aggregation across relations (pattern P3) ---
    @pl.when(r == 0)
    def _():
        h_acc[...] = jnp.zeros_like(h_acc)

    h_acc[...] += h_r

    # ---- On the last relation: u_dot_v scores for pos and neg graphs -------
    @pl.when(r == pl.num_programs(0) - 1)
    def _():
        h = h_acc[...]                                               # (N_PAD, F_PAD) f32
        # Gram matrix: gram[i, j] = <h_i, h_j>  (NT matmul, f32 acc).
        gram = jax.lax.dot_general(h, h, (((1,), (1,)), ((), ())),
                                   preferred_element_type=jnp.float32)
        node_iota = jax.lax.broadcasted_iota(jnp.int32, (N_PAD, E_PAD), 0)

        def scores(u_row, v_row):
            # One-hot gather driven by the index rows; padded edges use -1 -> 0 score.
            gu = (node_iota == u_row).astype(jnp.float32)            # (N_PAD, E_PAD)
            gv = (node_iota == v_row).astype(jnp.float32)
            picked = jnp.dot(gram, gv, preferred_element_type=jnp.float32)
            return jnp.sum(gu * picked, axis=0, keepdims=True)       # (1, E_PAD) lane-dense

        pos_ref[...] = scores(pu_ref[...], pv_ref[...])
        neg_ref[...] = scores(nu_ref[...], nv_ref[...])


# ---------------------------------------------------------------------------
# Wrapper: pad/pack parameters, run the single fused pallas_call
# ---------------------------------------------------------------------------
@jax.jit
def gat_link_predict(x, ws, attn_ls, attn_rs, biases, adjs,
                     pos_u, pos_v, neg_u, neg_v):
    """
    x:        (N, F_in)  f32 node features
    ws:       (R, F_in, F_out)   GATConv fc weights
    attn_ls:  (R, 1, F_out)      attn_l
    attn_rs:  (R, 1, F_out)      attn_r
    biases:   (R, F_out)         GATConv bias
    adjs:     (R, N, N)          adj[r, d, s] != 0 iff edge s -> d in relation r
    pos_u/pos_v/neg_u/neg_v: (E,) int node indices of the score graphs
    returns:  pos_score (E,1,1) f32, neg_score (E,1,1) f32
    """
    R, F_in, F_out = ws.shape
    N = x.shape[0]
    E = pos_u.shape[0]
    assert N <= N_PAD and E <= E_PAD and F_in <= F_PAD and F_out + 2 <= F_PAD

    # Fold attn_l / attn_r into the fc matmul: x @ [W | W a_l^T | W a_r^T].
    col_l = jnp.einsum("rio,ro->ri", ws, attn_ls[:, 0, :])[..., None]   # (R, F_in, 1)
    col_r = jnp.einsum("rio,ro->ri", ws, attn_rs[:, 0, :])[..., None]
    w_ext = jnp.concatenate([ws, col_l, col_r], axis=-1)                # (R, F_in, F_out+2)
    w_ext = jnp.pad(w_ext, ((0, 0), (0, F_PAD - F_in), (0, F_PAD - (F_out + 2))))
    w_ext = w_ext.astype(jnp.bfloat16)

    x_p = jnp.pad(x, ((0, N_PAD - N), (0, F_PAD - F_in))).astype(jnp.bfloat16)
    b_p = jnp.pad(biases, ((0, 0), (0, F_PAD - F_out)))[:, None, :].astype(jnp.float32)
    adj_p = jnp.pad((adjs != 0).astype(jnp.int8),
                    ((0, 0), (0, N_PAD - N), (0, N_PAD - N)))

    def pad_idx(idx):
        return jnp.pad(idx.astype(jnp.int32), (0, E_PAD - E),
                       constant_values=-1)[None, :]                     # (1, E_PAD)

    pu, pv, nu, nv = map(pad_idx, (pos_u, pos_v, neg_u, neg_v))

    kernel = functools.partial(_fused_kernel, int(F_out))

    pos_row, neg_row = pl.pallas_call(
        kernel,
        out_shape=(jax.ShapeDtypeStruct((1, E_PAD), jnp.float32),
                   jax.ShapeDtypeStruct((1, E_PAD), jnp.float32)),
        grid_spec=pltpu.PrefetchScalarGridSpec(
            num_scalar_prefetch=0,
            grid=(R,),
            in_specs=[
                pl.BlockSpec((N_PAD, F_PAD), lambda r: (0, 0)),           # x (shared)
                pl.BlockSpec((None, F_PAD, F_PAD), lambda r: (r, 0, 0)),  # w_ext[r]
                pl.BlockSpec((None, 1, F_PAD), lambda r: (r, 0, 0)),      # bias[r]
                pl.BlockSpec((None, N_PAD, N_PAD), lambda r: (r, 0, 0)),  # adj[r] int8
                pl.BlockSpec((1, E_PAD), lambda r: (0, 0)),               # pos_u
                pl.BlockSpec((1, E_PAD), lambda r: (0, 0)),               # pos_v
                pl.BlockSpec((1, E_PAD), lambda r: (0, 0)),               # neg_u
                pl.BlockSpec((1, E_PAD), lambda r: (0, 0)),               # neg_v
            ],
            out_specs=[
                pl.BlockSpec((1, E_PAD), lambda r: (0, 0)),
                pl.BlockSpec((1, E_PAD), lambda r: (0, 0)),
            ],
            scratch_shapes=[pltpu.VMEM((N_PAD, F_PAD), jnp.float32)],     # h accumulator
        ),
        compiler_params=pltpu.CompilerParams(
            dimension_semantics=("arbitrary",)),
    )(x_p, w_ext, b_p, adj_p, pu, pv, nu, nv)

    # DGL shape convention: (E, num_heads=1, 1)
    pos_score = pos_row[0, :E].reshape(E, 1, 1)
    neg_score = neg_row[0, :E].reshape(E, 1, 1)
    return pos_score, neg_score


# ---------------------------------------------------------------------------
# Main
# ---------------------------------------------------------------------------
if __name__ == "__main__":
    key = jax.random.PRNGKey(0)

    N = 16            # nodes in the block (src == dst node set)
    F_IN = 8          # in_features
    F_OUT = 8         # out_features
    E = 12            # edges in pos_g / neg_g
    REL_NAMES = ("follows", "likes")
    R = len(REL_NAMES)

    keys = jax.random.split(key, 4 * R + 8)
    ki = iter(keys)

    # Node features
    x = jax.random.normal(next(ki), (N, F_IN), dtype=jnp.float32)

    # Per-relation GATConv parameters + dense adjacency masks (with self loops).
    ws, als, ars, bs, adjs = [], [], [], [], []
    for _ in REL_NAMES:
        ws.append(jax.random.normal(next(ki), (F_IN, F_OUT), dtype=jnp.float32) * 0.3)
        als.append(jax.random.normal(next(ki), (1, F_OUT), dtype=jnp.float32) * 0.3)
        ars.append(jax.random.normal(next(ki), (1, F_OUT), dtype=jnp.float32) * 0.3)
        bs.append(jnp.zeros((F_OUT,), dtype=jnp.float32))
        a = (jax.random.uniform(next(ki), (N, N)) < 0.25).astype(jnp.float32)
        a = jnp.maximum(a, jnp.eye(N, dtype=jnp.float32))   # avoid 0-in-degree dsts
        adjs.append(a)
    ws = jnp.stack(ws)
    als = jnp.stack(als)
    ars = jnp.stack(ars)
    bs = jnp.stack(bs)
    adjs = jnp.stack(adjs)

    # Positive / negative graph edges (u -> v)
    pos_u = jax.random.randint(next(ki), (E,), 0, N)
    pos_v = jax.random.randint(next(ki), (E,), 0, N)
    neg_u = jax.random.randint(next(ki), (E,), 0, N)
    neg_v = jax.random.randint(next(ki), (E,), 0, N)

    pos_score, neg_score = gat_link_predict(
        x, ws, als, ars, bs, adjs, pos_u, pos_v, neg_u, neg_v)
    jax.block_until_ready((pos_score, neg_score))

    assert pos_score.shape == (E, 1, 1) and neg_score.shape == (E, 1, 1)
    assert bool(jnp.all(jnp.isfinite(pos_score))) and bool(jnp.all(jnp.isfinite(neg_score)))
    print("KERNEL_OK")
</pallas_src>

<mosaic_0001>
module attributes {stable_mosaic.version = 11 : i64} {
  func.func @_fused_kernel(%arg0: i32, %arg1: memref<128x128xbf16, #tpu.memory_space<vmem>>, %arg2: memref<1x128x128xbf16, #tpu.memory_space<vmem>>, %arg3: memref<1x1x128xf32, #tpu.memory_space<vmem>>, %arg4: memref<1x128x128xi8, #tpu.memory_space<vmem>>, %arg5: memref<1x128xi32, #tpu.memory_space<vmem>>, %arg6: memref<1x128xi32, #tpu.memory_space<vmem>>, %arg7: memref<1x128xi32, #tpu.memory_space<vmem>>, %arg8: memref<1x128xi32, #tpu.memory_space<vmem>>, %arg9: memref<1x128xf32, #tpu.memory_space<vmem>>, %arg10: memref<1x128xf32, #tpu.memory_space<vmem>>, %arg11: memref<128x128xf32, #tpu.memory_space<vmem>>) attributes {dimension_semantics = [#tpu.dimension_semantics<arbitrary>], iteration_bounds = array<i64: 2>, scalar_prefetch = 0 : i64, scratch_operands = 1 : i64, tpu.core_type = #tpu.core_type<tc>, window_params = [{pipeline_mode = #tpu.pipeline_mode<synchronous>, transform_indices = @transform_0, window_bounds = array<i64: 128, 128>}, {transform_indices = @transform_1, window_bounds = array<i64: 1, 128, 128>}, {transform_indices = @transform_2, window_bounds = array<i64: 1, 1, 128>}, {transform_indices = @transform_3, window_bounds = array<i64: 1, 128, 128>}, {pipeline_mode = #tpu.pipeline_mode<synchronous>, transform_indices = @transform_4, window_bounds = array<i64: 1, 128>}, {pipeline_mode = #tpu.pipeline_mode<synchronous>, transform_indices = @transform_5, window_bounds = array<i64: 1, 128>}, {pipeline_mode = #tpu.pipeline_mode<synchronous>, transform_indices = @transform_6, window_bounds = array<i64: 1, 128>}, {pipeline_mode = #tpu.pipeline_mode<synchronous>, transform_indices = @transform_7, window_bounds = array<i64: 1, 128>}, {pipeline_mode = #tpu.pipeline_mode<synchronous>, transform_indices = @transform_8, window_bounds = array<i64: 1, 128>}, {pipeline_mode = #tpu.pipeline_mode<synchronous>, transform_indices = @transform_9, window_bounds = array<i64: 1, 128>}]} {
    %c0 = arith.constant 0 : index
    %c0_0 = arith.constant 0 : index
    %0 = vector.load %arg1[%c0, %c0_0] : memref<128x128xbf16, #tpu.memory_space<vmem>>, vector<128x128xbf16>
    %c0_1 = arith.constant 0 : index
    %c0_2 = arith.constant 0 : index
    %c0_3 = arith.constant 0 : index
    %1 = vector.load %arg2[%c0_1, %c0_2, %c0_3] : memref<1x128x128xbf16, #tpu.memory_space<vmem>>, vector<1x128x128xbf16>
    %2 = vector.shape_cast %1 : vector<1x128x128xbf16> to vector<128x128xbf16>
    %cst = arith.constant dense<0.000000e+00> : vector<128x128xf32>
    %3 = tpu.matmul %0, %2, %cst {dimension_numbers = #tpu.dot_dimension_numbers<[1], [0], [0], [1], [0, 0, 1, 1], [], []>} : vector<128x128xbf16>, vector<128x128xbf16>, vector<128x128xf32> -> vector<128x128xf32>
    %4 = vector.extract_strided_slice %3 {offsets = [0, 8], sizes = [128, 1], strides = [1, 1]} : vector<128x128xf32> to vector<128x1xf32>
    %5 = vector.extract_strided_slice %3 {offsets = [0, 9], sizes = [128, 1], strides = [1, 1]} : vector<128x128xf32> to vector<128x1xf32>
    %6 = tpu.transpose %4, [1, 0] : vector<128x1xf32> -> vector<1x128xf32>
    %7 = vector.broadcast %5 : vector<128x1xf32> to vector<128x128xf32>
    %8 = vector.broadcast %6 : vector<1x128xf32> to vector<128x128xf32>
    %9 = arith.addf %7, %8 : vector<128x128xf32>
    %cst_4 = arith.constant 0.000000e+00 : f32
    %10 = vector.broadcast %cst_4 : f32 to vector<128x128xf32>
    %11 = arith.cmpf ogt, %9, %10 : vector<128x128xf32>
    %cst_5 = arith.constant 2.000000e-01 : f32
    %12 = vector.broadcast %cst_5 : f32 to vector<128x128xf32>
    %13 = arith.mulf %12, %9 : vector<128x128xf32>
    %14 = arith.select %11, %9, %13 : vector<128x128xi1>, vector<128x128xf32>
    %c0_6 = arith.constant 0 : index
    %c0_7 = arith.constant 0 : index
    %c0_8 = arith.constant 0 : index
    %15 = vector.load %arg4[%c0_6, %c0_7, %c0_8] : memref<1x128x128xi8, #tpu.memory_space<vmem>>, vector<1x128x128xi8>
    %16 = vector.shape_cast %15 : vector<1x128x128xi8> to vector<128x128xi8>
    %17 = arith.sitofp %16 : vector<128x128xi8> to vector<128x128xf32>
    %cst_9 = arith.constant 0.000000e+00 : f32
    %18 = vector.broadcast %cst_9 : f32 to vector<128x128xf32>
    %19 = arith.cmpf ogt, %17, %18 : vector<128x128xf32>
    %cst_10 = arith.constant -1.000000e+30 : f32
    %20 = vector.broadcast %cst_10 : f32 to vector<128x128xf32>
    %21 = arith.select %19, %14, %20 : vector<128x128xi1>, vector<128x128xf32>
    %cst_11 = arith.constant dense<0xFF800000> : vector<128xf32>
    %22 = vector.multi_reduction <maximumf>, %21, %cst_11 [1] : vector<128x128xf32> to vector<128xf32>
    %23 = vector.shape_cast %22 : vector<128xf32> to vector<128x1xf32>
    %24 = vector.broadcast %23 : vector<128x1xf32> to vector<128x128xf32>
    %25 = arith.subf %21, %24 : vector<128x128xf32>
    %26 = math.exp %25 : vector<128x128xf32>
    %cst_12 = arith.constant 0.000000e+00 : f32
    %27 = vector.broadcast %cst_12 : f32 to vector<128x128xf32>
    %28 = arith.select %19, %26, %27 : vector<128x128xi1>, vector<128x128xf32>
    %cst_13 = arith.constant dense<0.000000e+00> : vector<128xf32>
    %29 = vector.multi_reduction <add>, %28, %cst_13 [1] : vector<128x128xf32> to vector<128xf32>
    %30 = vector.shape_cast %29 : vector<128xf32> to vector<128x1xf32>
    %cst_14 = arith.constant 1.000000e-30 : f32
    %31 = vector.broadcast %cst_14 : f32 to vector<128x1xf32>
    %32 = arith.maximumf %30, %31 : vector<128x1xf32>
    %33 = tpu.reciprocal %32 {approx = true} : vector<128x1xf32> -> vector<128x1xf32>
    %34 = vector.broadcast %33 : vector<128x1xf32> to vector<128x128xf32>
    %35 = arith.mulf %28, %34 : vector<128x128xf32>
    %36 = tpu.iota {dimensions = array<i32: 1>} : vector<1x128xi32>
    %c8_i32 = arith.constant 8 : i32
    %37 = vector.broadcast %c8_i32 : i32 to vector<1x128xi32>
    %38 = arith.cmpi slt, %36, %37 : vector<1x128xi32>
    %39 = arith.extui %38 : vector<1x128xi1> to vector<1x128xi32>
    %40 = arith.sitofp %39 : vector<1x128xi32> to vector<1x128xf32>
    %41 = vector.broadcast %40 : vector<1x128xf32> to vector<128x128xf32>
    %42 = arith.mulf %3, %41 : vector<128x128xf32>
    %43 = arith.truncf %35 : vector<128x128xf32> to vector<128x128xbf16>
    %44 = arith.truncf %42 : vector<128x128xf32> to vector<128x128xbf16>
    %cst_15 = arith.constant dense<0.000000e+00> : vector<128x128xf32>
    %45 = tpu.matmul %43, %44, %cst_15 {dimension_numbers = #tpu.dot_dimension_numbers<[1], [0], [0], [1], [0, 0, 1, 1], [], []>} : vector<128x128xbf16>, vector<128x128xbf16>, vector<128x128xf32> -> vector<128x128xf32>
    %c0_16 = arith.constant 0 : index
    %c0_17 = arith.constant 0 : index
    %c0_18 = arith.constant 0 : index
    %46 = vector.load %arg3[%c0_16, %c0_17, %c0_18] : memref<1x1x128xf32, #tpu.memory_space<vmem>>, vector<1x1x128xf32>
    %47 = vector.shape_cast %46 : vector<1x1x128xf32> to vector<1x128xf32>
    %48 = vector.broadcast %47 : vector<1x128xf32> to vector<128x128xf32>
    %49 = arith.addf %45, %48 : vector<128x128xf32>
    %cst_19 = arith.constant 0.000000e+00 : f32
    %50 = vector.broadcast %cst_19 : f32 to vector<128x128xf32>
    %51 = arith.maximumf %49, %50 : vector<128x128xf32>
    %c0_i32 = arith.constant 0 : i32
    %52 = arith.cmpi eq, %arg0, %c0_i32 : i32
    %53 = arith.extui %52 : i1 to i32
    %c0_i32_20 = arith.constant 0 : i32
    %54 = arith.cmpi ne, %53, %c0_i32_20 : i32
    scf.if %54 {
      %cst_26 = arith.constant 0.000000e+00 : f32
      %61 = vector.broadcast %cst_26 : f32 to vector<128x128xf32>
      %c0_27 = arith.constant 0 : index
      %c0_28 = arith.constant 0 : index
      %62 = vector.load %arg11[%c0_27, %c0_28] : memref<128x128xf32, #tpu.memory_space<vmem>>, vector<128x128xf32>
      tpu.vector_store %arg11[%c0_27, %c0_28], %61 {strides = array<i32>} : memref<128x128xf32, #tpu.memory_space<vmem>>, vector<128x128xf32>,
    } else {
    }
    %c0_21 = arith.constant 0 : index
    %c0_22 = arith.constant 0 : index
    %55 = vector.load %arg11[%c0_21, %c0_22] : memref<128x128xf32, #tpu.memory_space<vmem>>, vector<128x128xf32>
    %56 = arith.addf %55, %51 : vector<128x128xf32>
    %c0_23 = arith.constant 0 : index
    %c0_24 = arith.constant 0 : index
    %57 = vector.load %arg11[%c0_23, %c0_24] : memref<128x128xf32, #tpu.memory_space<vmem>>, vector<128x128xf32>
    tpu.vector_store %arg11[%c0_23, %c0_24], %56 {strides = array<i32>} : memref<128x128xf32, #tpu.memory_space<vmem>>, vector<128x128xf32>,
    %c1_i32 = arith.constant 1 : i32
    %58 = arith.cmpi eq, %arg0, %c1_i32 : i32
    %59 = arith.extui %58 : i1 to i32
    %c0_i32_25 = arith.constant 0 : i32
    %60 = arith.cmpi ne, %59, %c0_i32_25 : i32
    scf.if %60 {
      %c0_26 = arith.constant 0 : index
      %c0_27 = arith.constant 0 : index
      %61 = vector.load %arg11[%c0_26, %c0_27] : memref<128x128xf32, #tpu.memory_space<vmem>>, vector<128x128xf32>
      %cst_28 = arith.constant dense<0.000000e+00> : vector<128x128xf32>
      %62 = tpu.matmul %61, %61, %cst_28 {dimension_numbers = #tpu.dot_dimension_numbers<[1], [1], [0], [0], [0, 0, 1, 0], [], []>} : vector<128x128xf32>, vector<128x128xf32>, vector<128x128xf32> -> vector<128x128xf32>
      %63 = tpu.iota {dimensions = array<i32: 0>} : vector<128x128xi32>
      %c0_29 = arith.constant 0 : index
      %c0_30 = arith.constant 0 : index
      %64 = vector.load %arg5[%c0_29, %c0_30] : memref<1x128xi32, #tpu.memory_space<vmem>>, vector<1x128xi32>
      %c0_31 = arith.constant 0 : index
      %c0_32 = arith.constant 0 : index
      %65 = vector.load %arg6[%c0_31, %c0_32] : memref<1x128xi32, #tpu.memory_space<vmem>>, vector<1x128xi32>
      %66 = vector.broadcast %64 : vector<1x128xi32> to vector<128x128xi32>
      %67 = arith.cmpi eq, %63, %66 : vector<128x128xi32>
      %68 = arith.extui %67 : vector<128x128xi1> to vector<128x128xi32>
      %69 = arith.sitofp %68 : vector<128x128xi32> to vector<128x128xf32>
      %70 = vector.broadcast %65 : vector<1x128xi32> to vector<128x128xi32>
      %71 = arith.cmpi eq, %63, %70 : vector<128x128xi32>
      %72 = arith.extui %71 : vector<128x128xi1> to vector<128x128xi32>
      %73 = arith.sitofp %72 : vector<128x128xi32> to vector<128x128xf32>
      %cst_33 = arith.constant dense<0.000000e+00> : vector<128x128xf32>
      %74 = tpu.matmul %62, %73, %cst_33 {dimension_numbers = #tpu.dot_dimension_numbers<[1], [0], [0], [1], [0, 0, 1, 1], [], []>} : vector<128x128xf32>, vector<128x128xf32>, vector<128x128xf32> -> vector<128x128xf32>
      %75 = arith.mulf %69, %74 : vector<128x128xf32>
      %cst_34 = arith.constant dense<0.000000e+00> : vector<128xf32>
      %76 = vector.multi_reduction <add>, %75, %cst_34 [0] : vector<128x128xf32> to vector<128xf32>
      %77 = vector.shape_cast %76 : vector<128xf32> to vector<1x128xf32>
      %c0_35 = arith.constant 0 : index
      %c0_36 = arith.constant 0 : index
      %78 = vector.load %arg9[%c0_35, %c0_36] : memref<1x128xf32, #tpu.memory_space<vmem>>, vector<1x128xf32>
      tpu.vector_store %arg9[%c0_35, %c0_36], %77 {strides = array<i32>} : memref<1x128xf32, #tpu.memory_space<vmem>>, vector<1x128xf32>,
      %c0_37 = arith.constant 0 : index
      %c0_38 = arith.constant 0 : index
      %79 = vector.load %arg7[%c0_37, %c0_38] : memref<1x128xi32, #tpu.memory_space<vmem>>, vector<1x128xi32>
      %c0_39 = arith.constant 0 : index
      %c0_40 = arith.constant 0 : index
      %80 = vector.load %arg8[%c0_39, %c0_40] : memref<1x128xi32, #tpu.memory_space<vmem>>, vector<1x128xi32>
      %81 = vector.broadcast %79 : vector<1x128xi32> to vector<128x128xi32>
      %82 = arith.cmpi eq, %63, %81 : vector<128x128xi32>
      %83 = arith.extui %82 : vector<128x128xi1> to vector<128x128xi32>
      %84 = arith.sitofp %83 : vector<128x128xi32> to vector<128x128xf32>
      %85 = vector.broadcast %80 : vector<1x128xi32> to vector<128x128xi32>
      %86 = arith.cmpi eq, %63, %85 : vector<128x128xi32>
      %87 = arith.extui %86 : vector<128x128xi1> to vector<128x128xi32>
      %88 = arith.sitofp %87 : vector<128x128xi32> to vector<128x128xf32>
      %cst_41 = arith.constant dense<0.000000e+00> : vector<128x128xf32>
      %89 = tpu.matmul %62, %88, %cst_41 {dimension_numbers = #tpu.dot_dimension_numbers<[1], [0], [0], [1], [0, 0, 1, 1], [], []>} : vector<128x128xf32>, vector<128x128xf32>, vector<128x128xf32> -> vector<128x128xf32>
      %90 = arith.mulf %84, %89 : vector<128x128xf32>
      %cst_42 = arith.constant dense<0.000000e+00> : vector<128xf32>
      %91 = vector.multi_reduction <add>, %90, %cst_42 [0] : vector<128x128xf32> to vector<128xf32>
      %92 = vector.shape_cast %91 : vector<128xf32> to vector<1x128xf32>
      %c0_43 = arith.constant 0 : index
      %c0_44 = arith.constant 0 : index
      %93 = vector.load %arg10[%c0_43, %c0_44] : memref<1x128xf32, #tpu.memory_space<vmem>>, vector<1x128xf32>
      tpu.vector_store %arg10[%c0_43, %c0_44], %92 {strides = array<i32>} : memref<1x128xf32, #tpu.memory_space<vmem>>, vector<1x128xf32>,
    } else {
    }
    return
  }
  func.func @transform_0(%arg0: i32) -> (i32, i32) {
    %c0_i32 = arith.constant 0 : i32
    %c0_i32_0 = arith.constant 0 : i32
    %c0_i32_1 = arith.constant 0 : i32
    return %c0_i32, %c0_i32_0 : i32, i32
  }
  func.func @transform_1(%arg0: i32) -> (i32, i32, i32) {
    %c0_i32 = arith.constant 0 : i32
    %c0_i32_0 = arith.constant 0 : i32
    %c0_i32_1 = arith.constant 0 : i32
    return %arg0, %c0_i32, %c0_i32_0 : i32, i32, i32
  }
  func.func @transform_2(%arg0: i32) -> (i32, i32, i32) {
    %c0_i32 = arith.constant 0 : i32
    %c0_i32_0 = arith.constant 0 : i32
    %c0_i32_1 = arith.constant 0 : i32
    return %arg0, %c0_i32, %c0_i32_0 : i32, i32, i32
  }
  func.func @transform_3(%arg0: i32) -> (i32, i32, i32) {
    %c0_i32 = arith.constant 0 : i32
    %c0_i32_0 = arith.constant 0 : i32
    %c0_i32_1 = arith.constant 0 : i32
    return %arg0, %c0_i32, %c0_i32_0 : i32, i32, i32
  }
  func.func @transform_4(%arg0: i32) -> (i32, i32) {
    %c0_i32 = arith.constant 0 : i32
    %c0_i32_0 = arith.constant 0 : i32
    %c0_i32_1 = arith.constant 0 : i32
    return %c0_i32, %c0_i32_0 : i32, i32
  }
  func.func @transform_5(%arg0: i32) -> (i32, i32) {
    %c0_i32 = arith.constant 0 : i32
    %c0_i32_0 = arith.constant 0 : i32
    %c0_i32_1 = arith.constant 0 : i32
    return %c0_i32, %c0_i32_0 : i32, i32
  }
  func.func @transform_6(%arg0: i32) -> (i32, i32) {
    %c0_i32 = arith.constant 0 : i32
    %c0_i32_0 = arith.constant 0 : i32
    %c0_i32_1 = arith.constant 0 : i32
    return %c0_i32, %c0_i32_0 : i32, i32
  }
  func.func @transform_7(%arg0: i32) -> (i32, i32) {
    %c0_i32 = arith.constant 0 : i32
    %c0_i32_0 = arith.constant 0 : i32
    %c0_i32_1 = arith.constant 0 : i32
    return %c0_i32, %c0_i32_0 : i32, i32
  }
  func.func @transform_8(%arg0: i32) -> (i32, i32) {
    %c0_i32 = arith.constant 0 : i32
    %c0_i32_0 = arith.constant 0 : i32
    %c0_i32_1 = arith.constant 0 : i32
    return %c0_i32, %c0_i32_0 : i32, i32
  }
  func.func @transform_9(%arg0: i32) -> (i32, i32) {
    %c0_i32 = arith.constant 0 : i32
    %c0_i32_0 = arith.constant 0 : i32
    %c0_i32_1 = arith.constant 0 : i32
    return %c0_i32, %c0_i32_0 : i32, i32
  }
}

</mosaic_0001>

<llo_original>
// kernel: gat_link_predict.1
$region0: #{gat_link_predict.1}
  #allocation0 [shape = 'u32[]', space=smem, size = 0x4, offset = 0x4, fixed_abs, tag = 'smem constant byte address 0x4 - core index']
  #allocation1 [shape = 'u32[144,128]{1,0:T(1,128)}', space=vmem, size = 0x12000, scoped, tag = 'internal scratch']
  #allocation2 [shape = 'f32[128,128]{1,0:T(8,128)}', space=vmem, size = 0x10000, scoped, tag = 'scratch operand']
  %s0 = inlined_call_operand.vmem [shape: bf16[128,128], index: 0, kind: input, shape index: {}]
  %s1 = inlined_call_operand.vmem [shape: bf16[2,128,128], index: 1, kind: input, shape index: {}]
  %s2 = inlined_call_operand.vmem [shape: f32[2,1,128], index: 2, kind: input, shape index: {}]
  %s3 = inlined_call_operand.vmem [shape: s8[2,128,128], index: 3, kind: input, shape index: {}]
  %s4 = inlined_call_operand.vmem [shape: s32[1,128], index: 4, kind: input, shape index: {}]
  %s5 = inlined_call_operand.vmem [shape: s32[1,128], index: 5, kind: input, shape index: {}]
  %s6 = inlined_call_operand.vmem [shape: s32[1,128], index: 6, kind: input, shape index: {}]
  %s7 = inlined_call_operand.vmem [shape: s32[1,128], index: 7, kind: input, shape index: {}]
  %s8 = inlined_call_operand.vmem [shape: f32[1,128], index: 8, kind: output, shape index: {0}]
  %s9 = inlined_call_operand.vmem [shape: f32[1,128], index: 9, kind: output, shape index: {1}]
  %10 = xla_tuple %s8, %s9
  %s11 = sld [smem:[#allocation0]]
  $region81: #{gat_link_predict.1} parent=0
    _
  %s13 = ssub.s32 1, %s11
  %s14 = scalar_select 0, %s13, %s11
  loop: start=0, step=1, limit=4
  $region2: #{gat_link_predict.1} parent=0 // loop_pre_header
    _
  $region3: #{gat_link_predict.1} parent=0 // loop_header
    %s16 = sphi 0, %s20
    %p17 = scmp.ge.s32.totalorder %s16, 4
    %s24 = sphi 0, %s24
    %s26 = sphi 0, %s24
    %s27 = sphi 0, %s26
    %s41 = sphi 0, %s27
    %s47 = sphi 0, %s49
    %s50 = sphi 0, %s47
    %s51 = sphi 0, %s50
    %s67 = sphi 0, %s51
    %s73 = sphi 0, %s75
    %s76 = sphi 0, %s73
    %s77 = sphi 0, %s76
    %s93 = sphi 0, %s77
    %s99 = sphi 0, %s101
    %s102 = sphi 0, %s99
    %s103 = sphi 0, %s102
    %s119 = sphi 0, %s103
    %s123 = sphi 0, %s123
    %s125 = sphi 0, %s123
    %s126 = sphi 0, %s125
    %s140 = sphi 0, %s126
    %s144 = sphi 0, %s144
    %s146 = sphi 0, %s144
    %s147 = sphi 0, %s146
    %s161 = sphi 0, %s147
    %s165 = sphi 0, %s165
    %s167 = sphi 0, %s165
    %s168 = sphi 0, %s167
    %s182 = sphi 0, %s168
    %s186 = sphi 0, %s186
    %s188 = sphi 0, %s186
    %s189 = sphi 0, %s188
    %s203 = sphi 0, %s189
    %s207 = sphi 0, %s207
    %s209 = sphi 0, %s207
    %s210 = sphi 0, %s209
    %s224 = sphi 0, %s210
    %s228 = sphi 0, %s228
    %s230 = sphi 0, %s228
    %s231 = sphi 0, %s230
    %s245 = sphi 0, %s231
  $region4: #{gat_link_predict.1} parent=0 // loop_header_branch
    %19 = sbr.rel (%p17) target = $region8
  $region5: #{gat_link_predict.1} parent=0 // loop_body
    %s21 = ssub.s32 %s16, 1
    %s22 = ssub.s32 %s16, 2
    %s23 = sadd.s32 %s16, 1
    %s25 = sadd.s32 %s24, 1
    %p28 = scmp.eq.s32.totalorder %s16, 1
    %p29 = scmp.ne.s32.totalorder %s24, %s26
    %p30 = scmp.eq.s32.totalorder %s16, 0
    %p31 = por %p29, %p30
    %p32 = scmp.ne.s32.totalorder %s24, %s26
    %p33 = scmp.eq.s32.totalorder %s21, 1
    %p34 = por %p32, %p33
    %p35 = scmp.ne.s32.totalorder %s26, %s27
    %p36 = scmp.eq.s32.totalorder %s21, 0
    %p37 = por %p35, %p36
    %p38 = scmp.ne.s32.totalorder %s26, %s27
    %p39 = scmp.eq.s32.totalorder %s22, 1
    %p40 = por %p38, %p39
    %p42 = scmp.ne.s32.totalorder %s27, %s41
    %p43 = scmp.eq.s32.totalorder %s22, 0
    %p44 = por %p42, %p43
    %s45 = ssub.s32 %s16, %s23
    %p46 = scmp.eq.s32.totalorder %s45, 0
    %s48 = sadd.s32 %s47, 1
    %s49 = scalar_select %p46, %s47, %s48
    %p52 = pneg %p46
    %p53 = scmp.eq.s32.totalorder %s16, 1
    %p54 = por %p52, %p53
    %p55 = scmp.ne.s32.totalorder %s47, %s50
    %p56 = scmp.eq.s32.totalorder %s16, 0
    %p57 = por %p55, %p56
    %p58 = scmp.ne.s32.totalorder %s47, %s50
    %p59 = scmp.eq.s32.totalorder %s21, 1
    %p60 = por %p58, %p59
    %p61 = scmp.ne.s32.totalorder %s50, %s51
    %p62 = scmp.eq.s32.totalorder %s21, 0
    %p63 = por %p61, %p62
    %p64 = scmp.ne.s32.totalorder %s50, %s51
    %p65 = scmp.eq.s32.totalorder %s22, 1
    %p66 = por %p64, %p65
    %p68 = scmp.ne.s32.totalorder %s51, %s67
    %p69 = scmp.eq.s32.totalorder %s22, 0
    %p70 = por %p68, %p69
    %s71 = ssub.s32 %s16, %s23
    %p72 = scmp.eq.s32.totalorder %s71, 0
    %s74 = sadd.s32 %s73, 1
    %s75 = scalar_select %p72, %s73, %s74
    %p78 = pneg %p72
    %p79 = scmp.eq.s32.totalorder %s16, 1
    %p80 = por %p78, %p79
    %p81 = scmp.ne.s32.totalorder %s73, %s76
    %p82 = scmp.eq.s32.totalorder %s16, 0
    %p83 = por %p81, %p82
    %p84 = scmp.ne.s32.totalorder %s73, %s76
    %p85 = scmp.eq.s32.totalorder %s21, 1
    %p86 = por %p84, %p85
    %p87 = scmp.ne.s32.totalorder %s76, %s77
    %p88 = scmp.eq.s32.totalorder %s21, 0
    %p89 = por %p87, %p88
    %p90 = scmp.ne.s32.totalorder %s76, %s77
    %p91 = scmp.eq.s32.totalorder %s22, 1
    %p92 = por %p90, %p91
    %p94 = scmp.ne.s32.totalorder %s77, %s93
    %p95 = scmp.eq.s32.totalorder %s22, 0
    %p96 = por %p94, %p95
    %s97 = ssub.s32 %s16, %s23
    %p98 = scmp.eq.s32.totalorder %s97, 0
    %s100 = sadd.s32 %s99, 1
    %s101 = scalar_select %p98, %s99, %s100
    %p104 = pneg %p98
    %p105 = scmp.eq.s32.totalorder %s16, 1
    %p106 = por %p104, %p105
    %p107 = scmp.ne.s32.totalorder %s99, %s102
    %p108 = scmp.eq.s32.totalorder %s16, 0
    %p109 = por %p107, %p108
    %p110 = scmp.ne.s32.totalorder %s99, %s102
    %p111 = scmp.eq.s32.totalorder %s21, 1
    %p112 = por %p110, %p111
    %p113 = scmp.ne.s32.totalorder %s102, %s103
    %p114 = scmp.eq.s32.totalorder %s21, 0
    %p115 = por %p113, %p114
    %p116 = scmp.ne.s32.totalorder %s102, %s103
    %p117 = scmp.eq.s32.totalorder %s22, 1
    %p118 = por %p116, %p117
    %p120 = scmp.ne.s32.totalorder %s103, %s119
    %p121 = scmp.eq.s32.totalorder %s22, 0
    %p122 = por %p120, %p121
    %s124 = sadd.s32 %s123, 1
    %p127 = scmp.eq.s32.totalorder %s16, 1
    %p128 = scmp.ne.s32.totalorder %s123, %s125
    %p129 = scmp.eq.s32.totalorder %s16, 0
    %p130 = por %p128, %p129
    %p131 = scmp.ne.s32.totalorder %s123, %s125
    %p132 = scmp.eq.s32.totalorder %s21, 1
    %p133 = por %p131, %p132
    %p134 = scmp.ne.s32.totalorder %s125, %s126
    %p135 = scmp.eq.s32.totalorder %s21, 0
    %p136 = por %p134, %p135
    %p137 = scmp.ne.s32.totalorder %s125, %s126
    %p138 = scmp.eq.s32.totalorder %s22, 1
    %p139 = por %p137, %p138
    %p141 = scmp.ne.s32.totalorder %s126, %s140
    %p142 = scmp.eq.s32.totalorder %s22, 0
    %p143 = por %p141, %p142
    %s145 = sadd.s32 %s144, 1
    %p148 = scmp.eq.s32.totalorder %s16, 1
    %p149 = scmp.ne.s32.totalorder %s144, %s146
    %p150 = scmp.eq.s32.totalorder %s16, 0
    %p151 = por %p149, %p150
    %p152 = scmp.ne.s32.totalorder %s144, %s146
    %p153 = scmp.eq.s32.totalorder %s21, 1
    %p154 = por %p152, %p153
    %p155 = scmp.ne.s32.totalorder %s146, %s147
    %p156 = scmp.eq.s32.totalorder %s21, 0
    %p157 = por %p155, %p156
    %p158 = scmp.ne.s32.totalorder %s146, %s147
    %p159 = scmp.eq.s32.totalorder %s22, 1
    %p160 = por %p158, %p159
    %p162 = scmp.ne.s32.totalorder %s147, %s161
    %p163 = scmp.eq.s32.totalorder %s22, 0
    %p164 = por %p162, %p163
    %s166 = sadd.s32 %s165, 1
    %p169 = scmp.eq.s32.totalorder %s16, 1
    %p170 = scmp.ne.s32.totalorder %s165, %s167
    %p171 = scmp.eq.s32.totalorder %s16, 0
    %p172 = por %p170, %p171
    %p173 = scmp.ne.s32.totalorder %s165, %s167
    %p174 = scmp.eq.s32.totalorder %s21, 1
    %p175 = por %p173, %p174
    %p176 = scmp.ne.s32.totalorder %s167, %s168
    %p177 = scmp.eq.s32.totalorder %s21, 0
    %p178 = por %p176, %p177
    %p179 = scmp.ne.s32.totalorder %s167, %s168
    %p180 = scmp.eq.s32.totalorder %s22, 1
    %p181 = por %p179, %p180
    %p183 = scmp.ne.s32.totalorder %s168, %s182
    %p184 = scmp.eq.s32.totalorder %s22, 0
    %p185 = por %p183, %p184
    %s187 = sadd.s32 %s186, 1
    %p190 = scmp.eq.s32.totalorder %s16, 1
    %p191 = scmp.ne.s32.totalorder %s186, %s188
    %p192 = scmp.eq.s32.totalorder %s16, 0
    %p193 = por %p191, %p192
    %p194 = scmp.ne.s32.totalorder %s186, %s188
    %p195 = scmp.eq.s32.totalorder %s21, 1
    %p196 = por %p194, %p195
    %p197 = scmp.ne.s32.totalorder %s188, %s189
    %p198 = scmp.eq.s32.totalorder %s21, 0
    %p199 = por %p197, %p198
    %p200 = scmp.ne.s32.totalorder %s188, %s189
    %p201 = scmp.eq.s32.totalorder %s22, 1
    %p202 = por %p200, %p201
    %p204 = scmp.ne.s32.totalorder %s189, %s203
    %p205 = scmp.eq.s32.totalorder %s22, 0
    %p206 = por %p204, %p205
    %s208 = sadd.s32 %s207, 1
    %p211 = scmp.eq.s32.totalorder %s16, 1
    %p212 = scmp.ne.s32.totalorder %s207, %s209
    %p213 = scmp.eq.s32.totalorder %s16, 0
    %p214 = por %p212, %p213
    %p215 = scmp.ne.s32.totalorder %s207, %s209
    %p216 = scmp.eq.s32.totalorder %s21, 1
    %p217 = por %p215, %p216
    %p218 = scmp.ne.s32.totalorder %s209, %s210
    %p219 = scmp.eq.s32.totalorder %s21, 0
    %p220 = por %p218, %p219
    %p221 = scmp.ne.s32.totalorder %s209, %s210
    %p222 = scmp.eq.s32.totalorder %s22, 1
    %p223 = por %p221, %p222
    %p225 = scmp.ne.s32.totalorder %s210, %s224
    %p226 = scmp.eq.s32.totalorder %s22, 0
    %p227 = por %p225, %p226
    %s229 = sadd.s32 %s228, 1
    %p232 = scmp.eq.s32.totalorder %s16, 1
    %p233 = scmp.ne.s32.totalorder %s228, %s230
    %p234 = scmp.eq.s32.totalorder %s16, 0
    %p235 = por %p233, %p234
    %p236 = scmp.ne.s32.totalorder %s228, %s230
    %p237 = scmp.eq.s32.totalorder %s21, 1
    %p238 = por %p236, %p237
    %p239 = scmp.ne.s32.totalorder %s230, %s231
    %p240 = scmp.eq.s32.totalorder %s21, 0
    %p241 = por %p239, %p240
    %p242 = scmp.ne.s32.totalorder %s230, %s231
    %p243 = scmp.eq.s32.totalorder %s22, 1
    %p244 = por %p242, %p243
    %p246 = scmp.ne.s32.totalorder %s231, %s245
    %p247 = scmp.eq.s32.totalorder %s22, 0
    %p248 = por %p246, %p247
    %p249 = scmp.le.s32.totalorder 1, %s16
    %p250 = scmp.lt.s32.totalorder %s16, 3
    %p251 = pnand %p249, %p250
    %p252 = pneg %p251
    // Predicated region
    $region9: #{gat_link_predict.1} parent=5 // pred_check
      _
    $region10: #{gat_link_predict.1} parent=5 // pred_check_branch
      %254 = sbr.rel (%p251) target = $region12
    $region11: #{gat_link_predict.1} parent=5 // pred_region
      %s255 = ssub.s32 %s16, 1
      // Predicated region
      $region13: #{gat_link_predict.1} parent=11 // pred_check
        %p256 = pneg %p37
      $region14: #{gat_link_predict.1} parent=11 // pred_check_branch
        %258 = sbr.rel (%p256) target = $region16
      $region15: #{gat_link_predict.1} parent=11 // pred_region
        _
      $region16: #{gat_link_predict.1} parent=11 // pred_fallthru
        _
      // Predicated region
      $region17: #{gat_link_predict.1} parent=11 // pred_check
        %p259 = pneg %p136
      $region18: #{gat_link_predict.1} parent=11 // pred_check_branch
        %261 = sbr.rel (%p259) target = $region20
      $region19: #{gat_link_predict.1} parent=11 // pred_region
        _
      $region20: #{gat_link_predict.1} parent=11 // pred_fallthru
        _
      // Predicated region
      $region21: #{gat_link_predict.1} parent=11 // pred_check
        %p262 = pneg %p157
      $region22: #{gat_link_predict.1} parent=11 // pred_check_branch
        %264 = sbr.rel (%p262) target = $region24
      $region23: #{gat_link_predict.1} parent=11 // pred_region
        _
      $region24: #{gat_link_predict.1} parent=11 // pred_fallthru
        _
      // Predicated region
      $region25: #{gat_link_predict.1} parent=11 // pred_check
        %p265 = pneg %p178
      $region26: #{gat_link_predict.1} parent=11 // pred_check_branch
        %267 = sbr.rel (%p265) target = $region28
      $region27: #{gat_link_predict.1} parent=11 // pred_region
        _
      $region28: #{gat_link_predict.1} parent=11 // pred_fallthru
        _
      // Predicated region
      $region29: #{gat_link_predict.1} parent=11 // pred_check
        %p268 = pneg %p199
      $region30: #{gat_link_predict.1} parent=11 // pred_check_branch
        %270 = sbr.rel (%p268) target = $region32
      $region31: #{gat_link_predict.1} parent=11 // pred_region
        _
      $region32: #{gat_link_predict.1} parent=11 // pred_fallthru
        _
    $region12: #{gat_link_predict.1} parent=5 // pred_fallthru
      _
    %p271 = scmp.lt.s32.totalorder %s16, 2
    // Predicated region
    $region33: #{gat_link_predict.1} parent=5 // pred_check
      %p272 = pneg %p271
    $region34: #{gat_link_predict.1} parent=5 // pred_check_branch
      %274 = sbr.rel (%p272) target = $region36
    $region35: #{gat_link_predict.1} parent=5 // pred_region
      // Predicated region
      $region37: #{gat_link_predict.1} parent=35 // pred_check
        %p275 = pneg %p57
      $region38: #{gat_link_predict.1} parent=35 // pred_check_branch
        %277 = sbr.rel (%p275) target = $region40
      $region39: #{gat_link_predict.1} parent=35 // pred_region
        %p278 = scmp.lt.s32.totalorder %s16, 1
        %s279 = scalar_select %p278, %s16, 1
        %s280 = smul.addr %s279, 16
        %s281 = smul.addr %s280, 4
        %s282 = scalar_lea.vmem %s1, %s281
      $region40: #{gat_link_predict.1} parent=35 // pred_fallthru
        _
      // Predicated region
      $region41: #{gat_link_predict.1} parent=35 // pred_check
        %p283 = pneg %p83
      $region42: #{gat_link_predict.1} parent=35 // pred_check_branch
        %285 = sbr.rel (%p283) target = $region44
      $region43: #{gat_link_predict.1} parent=35 // pred_region
        %p286 = scmp.lt.s32.totalorder %s16, 1
        %s287 = scalar_select %p286, %s16, 1
        %s288 = scalar_lea.vmem %s2, %s287
      $region44: #{gat_link_predict.1} parent=35 // pred_fallthru
        _
      // Predicated region
      $region45: #{gat_link_predict.1} parent=35 // pred_check
        %p289 = pneg %p109
      $region46: #{gat_link_predict.1} parent=35 // pred_check_branch
        %291 = sbr.rel (%p289) target = $region48
      $region47: #{gat_link_predict.1} parent=35 // pred_region
        %p292 = scmp.lt.s32.totalorder %s16, 1
        %s293 = scalar_select %p292, %s16, 1
        %s294 = smul.addr %s293, 4
        %s295 = smul.addr %s294, 8
        %s296 = scalar_lea.vmem %s3, %s295
      $region48: #{gat_link_predict.1} parent=35 // pred_fallthru
        _
    $region36: #{gat_link_predict.1} parent=5 // pred_fallthru
      _
    %p297 = scmp.le.s32.totalorder 1, %s16
    %p298 = scmp.lt.s32.totalorder %s16, 3
    %p299 = pnand %p297, %p298
    %p300 = pneg %p299
    // Predicated region
    $region49: #{gat_link_predict.1} parent=5 // pred_check
      _
    $region50: #{gat_link_predict.1} parent=5 // pred_check_branch
      %302 = sbr.rel (%p299) target = $region52
    $region51: #{gat_link_predict.1} parent=5 // pred_region
      %s303 = ssub.s32 %s16, 1
      %p304 = pneg %p37
      %p305 = pneg %p34
      %p306 = scmp.lt.s32.totalorder %s21, 1
      %s307 = scalar_select %p306, %s21, 1
      %s308 = smul.addr %s307, 16
      %s309 = smul.addr %s308, 4
      %s310 = scalar_lea.vmem %s1, %s309
      %p311 = pneg %p63
      %p312 = pneg %p60
      %p313 = scmp.lt.s32.totalorder %s21, 1
      %s314 = scalar_select %p313, %s21, 1
      %s315 = scalar_lea.vmem %s2, %s314
      %p316 = pneg %p89
      %p317 = pneg %p86
      %p318 = scmp.lt.s32.totalorder %s21, 1
      %s319 = scalar_select %p318, %s21, 1
      %s320 = smul.addr %s319, 4
      %s321 = smul.addr %s320, 8
      %s322 = scalar_lea.vmem %s3, %s321
      %p323 = pneg %p115
      %p324 = pneg %p112
      %p325 = pneg %p136
      %p326 = pneg %p133
      %p327 = pneg %p157
      %p328 = pneg %p154
      %p329 = pneg %p178
      %p330 = pneg %p175
      %p331 = pneg %p199
      %p332 = pneg %p196
      %p333 = pneg %p220
      %p334 = pneg %p217
      %p335 = pneg %p241
      %p336 = pneg %p238
      %p337 = scmp.lt.s32.totalorder %s21, 1
      %s338 = scalar_select %p337, %s21, 1
      %s339 = smul.addr %s338, 16
      %s340 = smul.addr %s339, 4
      %s341 = scalar_lea.vmem %s1, %s340
      %p342 = scmp.lt.s32.totalorder %s21, 1
      %s343 = scalar_select %p342, %s21, 1
      %s344 = scalar_lea.vmem %s2, %s343
      %p345 = scmp.lt.s32.totalorder %s21, 1
      %s346 = scalar_select %p345, %s21, 1
      %s347 = smul.addr %s346, 4
      %s348 = smul.addr %s347, 8
      %s349 = scalar_lea.vmem %s3, %s348
      %v351 = vld [vmem:[%s0] sm:$0xf]
      %v352 = vld [vmem:[%s0 + $0x4] sm:$0xf]
      %v353 = vld [vmem:[%s0 + $0x8] sm:$0xf]
      %v354 = vld [vmem:[%s0 + $0xc] sm:$0xf]
      %v355 = vld [vmem:[%s0 + $0x10] sm:$0xf]
      %v356 = vld [vmem:[%s0 + $0x14] sm:$0xf]
      %v357 = vld [vmem:[%s0 + $0x18] sm:$0xf]
      %v358 = vld [vmem:[%s0 + $0x1c] sm:$0xf]
      %v359 = vld [vmem:[%s0 + $0x20] sm:$0xf]
      %v360 = vld [vmem:[%s0 + $0x24] sm:$0xf]
      %v361 = vld [vmem:[%s0 + $0x28] sm:$0xf]
      %v362 = vld [vmem:[%s0 + $0x2c] sm:$0xf]
      %v363 = vld [vmem:[%s0 + $0x30] sm:$0xf]
      %v364 = vld [vmem:[%s0 + $0x34] sm:$0xf]
      %v365 = vld [vmem:[%s0 + $0x38] sm:$0xf]
      %v366 = vld [vmem:[%s0 + $0x3c] sm:$0xf]
      %v367 = vld [vmem:[%s341] sm:$0xf]
      %v368 = vld [vmem:[%s341 + $0x4] sm:$0xf]
      %v369 = vld [vmem:[%s341 + $0x8] sm:$0xf]
      %v370 = vld [vmem:[%s341 + $0xc] sm:$0xf]
      %v371 = vld [vmem:[%s341 + $0x10] sm:$0xf]
      %v372 = vld [vmem:[%s341 + $0x14] sm:$0xf]
      %v373 = vld [vmem:[%s341 + $0x18] sm:$0xf]
      %v374 = vld [vmem:[%s341 + $0x1c] sm:$0xf]
      %v375 = vld [vmem:[%s341 + $0x20] sm:$0xf]
      %v376 = vld [vmem:[%s341 + $0x24] sm:$0xf]
      %v377 = vld [vmem:[%s341 + $0x28] sm:$0xf]
      %v378 = vld [vmem:[%s341 + $0x2c] sm:$0xf]
      %v379 = vld [vmem:[%s341 + $0x30] sm:$0xf]
      %v380 = vld [vmem:[%s341 + $0x34] sm:$0xf]
      %v381 = vld [vmem:[%s341 + $0x38] sm:$0xf]
      %v382 = vld [vmem:[%s341 + $0x3c] sm:$0xf]
      %v399 = vunpack.c.l.b16 %v351
      %v400 = vunpack.c.l.b16 %v352
      %v401 = vunpack.c.l.b16 %v353
      %v402 = vunpack.c.l.b16 %v354
      %v403 = vunpack.c.l.b16 %v355
      %v404 = vunpack.c.l.b16 %v356
      %v405 = vunpack.c.l.b16 %v357
      %v406 = vunpack.c.l.b16 %v358
      %v407 = vunpack.c.l.b16 %v359
      %v408 = vunpack.c.l.b16 %v360
      %v409 = vunpack.c.l.b16 %v361
      %v410 = vunpack.c.l.b16 %v362
      %v411 = vunpack.c.l.b16 %v363
      %v412 = vunpack.c.l.b16 %v364
      %v413 = vunpack.c.l.b16 %v365
      %v414 = vunpack.c.l.b16 %v366
      %v415 = vpack.c.b16 %v400, %v399
      %v416 = vpack.c.b16 %v402, %v401
      %v417 = vpack.c.b16 %v404, %v403
      %v418 = vpack.c.b16 %v406, %v405
      %v419 = vpack.c.b16 %v408, %v407
      %v420 = vpack.c.b16 %v410, %v409
      %v421 = vpack.c.b16 %v412, %v411
      %v422 = vpack.c.b16 %v414, %v413
      %v447 = vunpack.c.l.b16 %v367
      %v448 = vunpack.c.l.b16 %v368
      %v449 = vunpack.c.l.b16 %v369
      %v450 = vunpack.c.l.b16 %v370
      %v451 = vunpack.c.l.b16 %v371
      %v452 = vunpack.c.l.b16 %v372
      %v453 = vunpack.c.l.b16 %v373
      %v454 = vunpack.c.l.b16 %v374
      %v455 = vunpack.c.l.b16 %v375
      %v456 = vunpack.c.l.b16 %v376
      %v457 = vunpack.c.l.b16 %v377
      %v458 = vunpack.c.l.b16 %v378
      %v459 = vunpack.c.l.b16 %v379
      %v460 = vunpack.c.l.b16 %v380
      %v461 = vunpack.c.l.b16 %v381
      %v462 = vunpack.c.l.b16 %v382
      %v463 = vpack.c.b16 %v448, %v447
      %v464 = vpack.c.b16 %v450, %v449
      %v465 = vpack.c.b16 %v452, %v451
      %v466 = vpack.c.b16 %v454, %v453
      %v467 = vpack.c.b16 %v456, %v455
      %v468 = vpack.c.b16 %v458, %v457
      %v469 = vpack.c.b16 %v460, %v459
      %v470 = vpack.c.b16 %v462, %v461
      %479 = vmatprep.subr.bf16.mxu0 0
      %480 = vmatpush1.bf16.msra.mxu0 %v463
      %481 = vmatprep.subr.bf16.mxu0 0
      %482 = vmatpush1.bf16.msra.mxu0 %v464
      %483 = vmatprep.subr.bf16.mxu0 0
      %484 = vmatpush1.bf16.msra.mxu0 %v465
      %485 = vmatprep.subr.bf16.mxu0 0
      %486 = vmatpush1.bf16.msra.mxu0 %v466
      %487 = vmatprep.subr.bf16.mxu0 0
      %488 = vmatpush1.bf16.msra.mxu0 %v467
      %489 = vmatprep.subr.bf16.mxu0 0
      %490 = vmatpush1.bf16.msra.mxu0 %v468
      %491 = vmatprep.subr.bf16.mxu0 0
      %492 = vmatpush1.bf16.msra.mxu0 %v469
      %493 = vmatprep.subr.bf16.mxu0 0
      %494 = vmatpush1.bf16.msra.mxu0 %v470
      %495 = vmatprep.subr.bf16.mxu0 0
      %496 = vmatpush1.bf16.msra.mxu0 0
      %497 = vmatprep.subr.bf16.mxu0 0
      %498 = vmatpush1.bf16.msra.mxu0 0
      %499 = vmatprep.subr.bf16.mxu0 0
      %500 = vmatpush1.bf16.msra.mxu0 0
      %501 = vmatprep.subr.bf16.mxu0 0
      %502 = vmatpush1.bf16.msra.mxu0 0
      %503 = vmatprep.subr.bf16.mxu0 0
      %504 = vmatpush1.bf16.msra.mxu0 0
      %505 = vmatprep.subr.bf16.mxu0 0
      %506 = vmatpush1.bf16.msra.mxu0 0
      %507 = vmatprep.subr.bf16.mxu0 0
      %508 = vmatpush1.bf16.msra.mxu0 0
      %509 = vmatprep.subr.bf16.mxu0 0
      %510 = vmatpush1.bf16.msra.mxu0 0
      %511 = vmatprep.mubr.bf16.mxu0 0
      %512 = vmatmul.mubr.bf16.gmra.mrb[0].mxu0 %v415
      %v513 = vpop.f32.mrb[0].mxu0
      %v514 = vadd.f32 0.0, %v513
      %v515 = vpop.f32.mrb[0].mxu0
      %v516 = vpop.f32.mrb[0].mxu0
      %v517 = vadd.f32 0.0, %v516
      %v518 = vpop.f32.mrb[0].mxu0
      %519 = vmatprep.mubr.bf16.mxu0 0
      %520 = vmatmul.mubr.bf16.gmra.mrb[0].mxu0 %v416
      %v521 = vpop.f32.mrb[0].mxu0
      %v522 = vadd.f32 0.0, %v521
      %v523 = vpop.f32.mrb[0].mxu0
      %v524 = vpop.f32.mrb[0].mxu0
      %v525 = vadd.f32 0.0, %v524
      %v526 = vpop.f32.mrb[0].mxu0
      %527 = vmatprep.mubr.bf16.mxu0 0
      %528 = vmatmul.mubr.bf16.gmra.mrb[0].mxu0 %v417
      %v529 = vpop.f32.mrb[0].mxu0
      %v530 = vadd.f32 0.0, %v529
      %v531 = vpop.f32.mrb[0].mxu0
      %v532 = vpop.f32.mrb[0].mxu0
      %v533 = vadd.f32 0.0, %v532
      %v534 = vpop.f32.mrb[0].mxu0
      %535 = vmatprep.mubr.bf16.mxu0 0
      %536 = vmatmul.mubr.bf16.gmra.mrb[0].mxu0 %v418
      %v537 = vpop.f32.mrb[0].mxu0
      %v538 = vadd.f32 0.0, %v537
      %v539 = vpop.f32.mrb[0].mxu0
      %v540 = vpop.f32.mrb[0].mxu0
      %v541 = vadd.f32 0.0, %v540
      %v542 = vpop.f32.mrb[0].mxu0
      %543 = vmatprep.mubr.bf16.mxu0 0
      %544 = vmatmul.mubr.bf16.gmra.mrb[0].mxu0 %v419
      %v545 = vpop.f32.mrb[0].mxu0
      %v546 = vadd.f32 0.0, %v545
      %v547 = vpop.f32.mrb[0].mxu0
      %v548 = vpop.f32.mrb[0].mxu0
      %v549 = vadd.f32 0.0, %v548
      %v550 = vpop.f32.mrb[0].mxu0
      %551 = vmatprep.mubr.bf16.mxu0 0
      %552 = vmatmul.mubr.bf16.gmra.mrb[0].mxu0 %v420
      %v553 = vpop.f32.mrb[0].mxu0
      %v554 = vadd.f32 0.0, %v553
      %v555 = vpop.f32.mrb[0].mxu0
      %v556 = vpop.f32.mrb[0].mxu0
      %v557 = vadd.f32 0.0, %v556
      %v558 = vpop.f32.mrb[0].mxu0
      %559 = vmatprep.mubr.bf16.mxu0 0
      %560 = vmatmul.mubr.bf16.gmra.mrb[0].mxu0 %v421
      %v561 = vpop.f32.mrb[0].mxu0
      %v562 = vadd.f32 0.0, %v561
      %v563 = vpop.f32.mrb[0].mxu0
      %v564 = vpop.f32.mrb[0].mxu0
      %v565 = vadd.f32 0.0, %v564
      %v566 = vpop.f32.mrb[0].mxu0
      %567 = vmatprep.mubr.bf16.mxu0 0
      %568 = vmatmul.mubr.bf16.gmra.mrb[0].mxu0 %v422
      %v569 = vpop.f32.mrb[0].mxu0
      %v570 = vadd.f32 0.0, %v569
      %v571 = vpop.f32.mrb[0].mxu0
      %v572 = vpop.f32.mrb[0].mxu0
      %v573 = vadd.f32 0.0, %v572
      %v574 = vpop.f32.mrb[0].mxu0
      %575 = vdwg.mxu0
      %592 = vrot.lane.b32.xlu0 %v514, 120
      %v593 = vpop.permute.xlu0 %592
      %594 = vrot.lane.b32.xlu0 %v517, 120
      %v595 = vpop.permute.xlu0 %594
      %596 = vrot.lane.b32.xlu0 %v522, 120
      %v597 = vpop.permute.xlu0 %596
      %598 = vrot.lane.b32.xlu0 %v525, 120
      %v599 = vpop.permute.xlu0 %598
      %600 = vrot.lane.b32.xlu0 %v530, 120
      %v601 = vpop.permute.xlu0 %600
      %602 = vrot.lane.b32.xlu0 %v533, 120
      %v603 = vpop.permute.xlu0 %602
      %604 = vrot.lane.b32.xlu0 %v538, 120
      %v605 = vpop.permute.xlu0 %604
      %606 = vrot.lane.b32.xlu0 %v541, 120
      %v607 = vpop.permute.xlu0 %606
      %608 = vrot.lane.b32.xlu0 %v546, 120
      %v609 = vpop.permute.xlu0 %608
      %610 = vrot.lane.b32.xlu0 %v549, 120
      %v611 = vpop.permute.xlu0 %610
      %612 = vrot.lane.b32.xlu0 %v554, 120
      %v613 = vpop.permute.xlu0 %612
      %614 = vrot.lane.b32.xlu0 %v557, 120
      %v615 = vpop.permute.xlu0 %614
      %616 = vrot.lane.b32.xlu0 %v562, 120
      %v617 = vpop.permute.xlu0 %616
      %618 = vrot.lane.b32.xlu0 %v565, 120
      %v619 = vpop.permute.xlu0 %618
      %620 = vrot.lane.b32.xlu0 %v570, 120
      %v621 = vpop.permute.xlu0 %620
      %622 = vrot.lane.b32.xlu0 %v573, 120
      %v623 = vpop.permute.xlu0 %622
      %640 = vxpose.xlu0.b32.start [1/16] %v593, 128
      %641 = vxpose.xlu0.b32.cont [2/16] %v595, 128
      %642 = vxpose.xlu0.b32.cont [3/16] %v597, 128
      %643 = vxpose.xlu0.b32.cont [4/16] %v599, 128
      %644 = vxpose.xlu0.b32.cont [5/16] %v601, 128
      %645 = vxpose.xlu0.b32.cont [6/16] %v603, 128
      %646 = vxpose.xlu0.b32.cont [7/16] %v605, 128
      %647 = vxpose.xlu0.b32.cont [8/16] %v607, 128
      %648 = vxpose.xlu0.b32.cont [9/16] %v609, 128
      %649 = vxpose.xlu0.b32.cont [10/16] %v611, 128
      %650 = vxpose.xlu0.b32.cont [11/16] %v613, 128
      %651 = vxpose.xlu0.b32.cont [12/16] %v615, 128
      %652 = vxpose.xlu0.b32.cont [13/16] %v617, 128
      %653 = vxpose.xlu0.b32.cont [14/16] %v619, 128
      %654 = vxpose.xlu0.b32.cont [15/16] %v621, 128
      %655 = vxpose.xlu0.b32.end [16/16] %v623, 128
      %v656 = vpop.trf.xlu0
      %v657 = vpop.trf.xlu0
      %v658 = vpop.trf.xlu0
      %v659 = vpop.trf.xlu0
      %v660 = vpop.trf.xlu0
      %v661 = vpop.trf.xlu0
      %v662 = vpop.trf.xlu0
      %v663 = vpop.trf.xlu0
      %v664 = vpop.trf.xlu0
      %v665 = vpop.trf.xlu0
      %v666 = vpop.trf.xlu0
      %v667 = vpop.trf.xlu0
      %v668 = vpop.trf.xlu0
      %v669 = vpop.trf.xlu0
      %v670 = vpop.trf.xlu0
      %v671 = vpop.trf.xlu0
      %672 = vset.pattern.permute.xlu0 9
      %673 = vperm.xlu0 %672, %v514
      %v674 = vpop.permute.xlu0 %673
      %676 = vset.pattern.permute.xlu0 9
      %677 = vperm.xlu0 %676, %v517
      %v678 = vpop.permute.xlu0 %677
      %680 = vset.pattern.permute.xlu0 9
      %681 = vperm.xlu0 %680, %v522
      %v682 = vpop.permute.xlu0 %681
      %684 = vset.pattern.permute.xlu0 9
      %685 = vperm.xlu0 %684, %v525
      %v686 = vpop.permute.xlu0 %685
      %688 = vset.pattern.permute.xlu0 9
      %689 = vperm.xlu0 %688, %v530
      %v690 = vpop.permute.xlu0 %689
      %692 = vset.pattern.permute.xlu0 9
      %693 = vperm.xlu0 %692, %v533
      %v694 = vpop.permute.xlu0 %693
      %696 = vset.pattern.permute.xlu0 9
      %697 = vperm.xlu0 %696, %v538
      %v698 = vpop.permute.xlu0 %697
      %700 = vset.pattern.permute.xlu0 9
      %701 = vperm.xlu0 %700, %v541
      %v702 = vpop.permute.xlu0 %701
      %704 = vset.pattern.permute.xlu0 9
      %705 = vperm.xlu0 %704, %v546
      %v706 = vpop.permute.xlu0 %705
      %708 = vset.pattern.permute.xlu0 9
      %709 = vperm.xlu0 %708, %v549
      %v710 = vpop.permute.xlu0 %709
      %712 = vset.pattern.permute.xlu0 9
      %713 = vperm.xlu0 %712, %v554
      %v714 = vpop.permute.xlu0 %713
      %716 = vset.pattern.permute.xlu0 9
      %717 = vperm.xlu0 %716, %v557
      %v718 = vpop.permute.xlu0 %717
      %720 = vset.pattern.permute.xlu0 9
      %721 = vperm.xlu0 %720, %v562
      %v722 = vpop.permute.xlu0 %721
      %724 = vset.pattern.permute.xlu0 9
      %725 = vperm.xlu0 %724, %v565
      %v726 = vpop.permute.xlu0 %725
      %728 = vset.pattern.permute.xlu0 9
      %729 = vperm.xlu0 %728, %v570
      %v730 = vpop.permute.xlu0 %729
      %732 = vset.pattern.permute.xlu0 9
      %733 = vperm.xlu0 %732, %v573
      %v734 = vpop.permute.xlu0 %733
      %v736 = vlaneseq
      %v737 = vshrl.u32 %v736, 7
      %v738 = vsub.s32 0, %v737
      %v739 = vrot.slane %v656, %v738
      %v740 = vadd.f32 %v674, %v739
      %v741 = vadd.f32 %v678, %v739
      %v742 = vadd.f32 %v682, %v739
      %v743 = vadd.f32 %v686, %v739
      %v744 = vadd.f32 %v690, %v739
      %v745 = vadd.f32 %v694, %v739
      %v746 = vadd.f32 %v698, %v739
      %v747 = vadd.f32 %v702, %v739
      %v748 = vadd.f32 %v706, %v739
      %v749 = vadd.f32 %v710, %v739
      %v750 = vadd.f32 %v714, %v739
      %v751 = vadd.f32 %v718, %v739
      %v752 = vadd.f32 %v722, %v739
      %v753 = vadd.f32 %v726, %v739
      %v754 = vadd.f32 %v730, %v739
      %v755 = vadd.f32 %v734, %v739
      %vm756 = vcmp.gt.f32.partialorder %v740, 0.0
      %vm757 = vcmp.gt.f32.partialorder %v741, 0.0
      %vm758 = vcmp.gt.f32.partialorder %v742, 0.0
      %vm759 = vcmp.gt.f32.partialorder %v743, 0.0
      %vm760 = vcmp.gt.f32.partialorder %v744, 0.0
      %vm761 = vcmp.gt.f32.partialorder %v745, 0.0
      %vm762 = vcmp.gt.f32.partialorder %v746, 0.0
      %vm763 = vcmp.gt.f32.partialorder %v747, 0.0
      %vm764 = vcmp.gt.f32.partialorder %v748, 0.0
      %vm765 = vcmp.gt.f32.partialorder %v749, 0.0
      %vm766 = vcmp.gt.f32.partialorder %v750, 0.0
      %vm767 = vcmp.gt.f32.partialorder %v751, 0.0
      %vm768 = vcmp.gt.f32.partialorder %v752, 0.0
      %vm769 = vcmp.gt.f32.partialorder %v753, 0.0
      %vm770 = vcmp.gt.f32.partialorder %v754, 0.0
      %vm771 = vcmp.gt.f32.partialorder %v755, 0.0
      %v772 = vmul.f32 %v740, 0.2
      %v773 = vmul.f32 %v741, 0.2
      %v774 = vmul.f32 %v742, 0.2
      %v775 = vmul.f32 %v743, 0.2
      %v776 = vmul.f32 %v744, 0.2
      %v777 = vmul.f32 %v745, 0.2
      %v778 = vmul.f32 %v746, 0.2
      %v779 = vmul.f32 %v747, 0.2
      %v780 = vmul.f32 %v748, 0.2
      %v781 = vmul.f32 %v749, 0.2
      %v782 = vmul.f32 %v750, 0.2
      %v783 = vmul.f32 %v751, 0.2
      %v784 = vmul.f32 %v752, 0.2
      %v785 = vmul.f32 %v753, 0.2
      %v786 = vmul.f32 %v754, 0.2
      %v787 = vmul.f32 %v755, 0.2
      %v788 = vsel %vm756, %v740, %v772
      %v789 = vsel %vm757, %v741, %v773
      %v790 = vsel %vm758, %v742, %v774
      %v791 = vsel %vm759, %v743, %v775
      %v792 = vsel %vm760, %v744, %v776
      %v793 = vsel %vm761, %v745, %v777
      %v794 = vsel %vm762, %v746, %v778
      %v795 = vsel %vm763, %v747, %v779
      %v796 = vsel %vm764, %v748, %v780
      %v797 = vsel %vm765, %v749, %v781
      %v798 = vsel %vm766, %v750, %v782
      %v799 = vsel %vm767, %v751, %v783
      %v800 = vsel %vm768, %v752, %v784
      %v801 = vsel %vm769, %v753, %v785
      %v802 = vsel %vm770, %v754, %v786
      %v803 = vsel %vm771, %v755, %v787
      %v804 = vld [vmem:[%s349] sm:$0xff]
      %v805 = vld [vmem:[%s349 + $0x8] sm:$0xff]
      %v806 = vld [vmem:[%s349 + $0x10] sm:$0xff]
      %v807 = vld [vmem:[%s349 + $0x18] sm:$0xff]
      %v808 = vunpack.c.0.s8 %v804
      %v809 = vunpack.c.1.s8 %v804
      %v810 = vunpack.c.2.s8 %v804
      %v811 = vunpack.c.3.s8 %v804
      %v812 = vunpack.c.0.s8 %v805
      %v813 = vunpack.c.1.s8 %v805
      %v814 = vunpack.c.2.s8 %v805
      %v815 = vunpack.c.3.s8 %v805
      %v816 = vunpack.c.0.s8 %v806
      %v817 = vunpack.c.1.s8 %v806
      %v818 = vunpack.c.2.s8 %v806
      %v819 = vunpack.c.3.s8 %v806
      %v820 = vunpack.c.0.s8 %v807
      %v821 = vunpack.c.1.s8 %v807
      %v822 = vunpack.c.2.s8 %v807
      %v823 = vunpack.c.3.s8 %v807
      %v824 = vcvt.s32.f32 %v808
      %v825 = vcvt.s32.f32 %v809
      %v826 = vcvt.s32.f32 %v810
      %v827 = vcvt.s32.f32 %v811
      %v828 = vcvt.s32.f32 %v812
      %v829 = vcvt.s32.f32 %v813
      %v830 = vcvt.s32.f32 %v814
      %v831 = vcvt.s32.f32 %v815
      %v832 = vcvt.s32.f32 %v816
      %v833 = vcvt.s32.f32 %v817
      %v834 = vcvt.s32.f32 %v818
      %v835 = vcvt.s32.f32 %v819
      %v836 = vcvt.s32.f32 %v820
      %v837 = vcvt.s32.f32 %v821
      %v838 = vcvt.s32.f32 %v822
      %v839 = vcvt.s32.f32 %v823
      %vm840 = vcmp.gt.f32.partialorder %v824, 0.0
      %vm841 = vcmp.gt.f32.partialorder %v825, 0.0
      %vm842 = vcmp.gt.f32.partialorder %v826, 0.0
      %vm843 = vcmp.gt.f32.partialorder %v827, 0.0
      %vm844 = vcmp.gt.f32.partialorder %v828, 0.0
      %vm845 = vcmp.gt.f32.partialorder %v829, 0.0
      %vm846 = vcmp.gt.f32.partialorder %v830, 0.0
      %vm847 = vcmp.gt.f32.partialorder %v831, 0.0
      %vm848 = vcmp.gt.f32.partialorder %v832, 0.0
      %vm849 = vcmp.gt.f32.partialorder %v833, 0.0
      %vm850 = vcmp.gt.f32.partialorder %v834, 0.0
      %vm851 = vcmp.gt.f32.partialorder %v835, 0.0
      %vm852 = vcmp.gt.f32.partialorder %v836, 0.0
      %vm853 = vcmp.gt.f32.partialorder %v837, 0.0
      %vm854 = vcmp.gt.f32.partialorder %v838, 0.0
      %vm855 = vcmp.gt.f32.partialorder %v839, 0.0
      %v856 = vsel %vm840, %v788, -1e+30
      %v857 = vsel %vm841, %v789, -1e+30
      %v858 = vsel %vm842, %v790, -1e+30
      %v859 = vsel %vm843, %v791, -1e+30
      %v860 = vsel %vm844, %v792, -1e+30
      %v861 = vsel %vm845, %v793, -1e+30
      %v862 = vsel %vm846, %v794, -1e+30
      %v863 = vsel %vm847, %v795, -1e+30
      %v864 = vsel %vm848, %v796, -1e+30
      %v865 = vsel %vm849, %v797, -1e+30
      %v866 = vsel %vm850, %v798, -1e+30
      %v867 = vsel %vm851, %v799, -1e+30
      %v868 = vsel %vm852, %v800, -1e+30
      %v869 = vsel %vm853, %v801, -1e+30
      %v870 = vsel %vm854, %v802, -1e+30
      %v871 = vsel %vm855, %v803, -1e+30
      %872 = vmax.xlane.f32.xlu0 %v856
      %v873 = vpop.xlane.xlu0 %872
      %874 = vmax.xlane.f32.xlu0 %v857
      %v875 = vpop.xlane.xlu0 %874
      %876 = vmax.xlane.f32.xlu0 %v858
      %v877 = vpop.xlane.xlu0 %876
      %878 = vmax.xlane.f32.xlu0 %v859
      %v879 = vpop.xlane.xlu0 %878
      %880 = vmax.xlane.f32.xlu0 %v860
      %v881 = vpop.xlane.xlu0 %880
      %882 = vmax.xlane.f32.xlu0 %v861
      %v883 = vpop.xlane.xlu0 %882
      %884 = vmax.xlane.f32.xlu0 %v862
      %v885 = vpop.xlane.xlu0 %884
      %886 = vmax.xlane.f32.xlu0 %v863
      %v887 = vpop.xlane.xlu0 %886
      %888 = vmax.xlane.f32.xlu0 %v864
      %v889 = vpop.xlane.xlu0 %888
      %890 = vmax.xlane.f32.xlu0 %v865
      %v891 = vpop.xlane.xlu0 %890
      %892 = vmax.xlane.f32.xlu0 %v866
      %v893 = vpop.xlane.xlu0 %892
      %894 = vmax.xlane.f32.xlu0 %v867
      %v895 = vpop.xlane.xlu0 %894
      %896 = vmax.xlane.f32.xlu0 %v868
      %v897 = vpop.xlane.xlu0 %896
      %898 = vmax.xlane.f32.xlu0 %v869
      %v899 = vpop.xlane.xlu0 %898
      %900 = vmax.xlane.f32.xlu0 %v870
      %v901 = vpop.xlane.xlu0 %900
      %902 = vmax.xlane.f32.xlu0 %v871
      %v903 = vpop.xlane.xlu0 %902
      %v904 = vsub.f32 %v856, %v873
      %v905 = vsub.f32 %v857, %v875
      %v906 = vsub.f32 %v858, %v877
      %v907 = vsub.f32 %v859, %v879
      %v908 = vsub.f32 %v860, %v881
      %v909 = vsub.f32 %v861, %v883
      %v910 = vsub.f32 %v862, %v885
      %v911 = vsub.f32 %v863, %v887
      %v912 = vsub.f32 %v864, %v889
      %v913 = vsub.f32 %v865, %v891
      %v914 = vsub.f32 %v866, %v893
      %v915 = vsub.f32 %v867, %v895
      %v916 = vsub.f32 %v868, %v897
      %v917 = vsub.f32 %v869, %v899
      %v918 = vsub.f32 %v870, %v901
      %v919 = vsub.f32 %v871, %v903
      %v920 = vmul.f32 %v904, 1.442695
      %v921 = vpow.pop %v920
      %v922 = vmul.f32 %v905, 1.442695
      %v923 = vpow.pop %v922
      %v924 = vmul.f32 %v906, 1.442695
      %v925 = vpow.pop %v924
      %v926 = vmul.f32 %v907, 1.442695
      %v927 = vpow.pop %v926
      %v928 = vmul.f32 %v908, 1.442695
      %v929 = vpow.pop %v928
      %v930 = vmul.f32 %v909, 1.442695
      %v931 = vpow.pop %v930
      %v932 = vmul.f32 %v910, 1.442695
      %v933 = vpow.pop %v932
      %v934 = vmul.f32 %v911, 1.442695
      %v935 = vpow.pop %v934
      %v936 = vmul.f32 %v912, 1.442695
      %v937 = vpow.pop %v936
      %v938 = vmul.f32 %v913, 1.442695
      %v939 = vpow.pop %v938
      %v940 = vmul.f32 %v914, 1.442695
      %v941 = vpow.pop %v940
      %v942 = vmul.f32 %v915, 1.442695
      %v943 = vpow.pop %v942
      %v944 = vmul.f32 %v916, 1.442695
      %v945 = vpow.pop %v944
      %v946 = vmul.f32 %v917, 1.442695
      %v947 = vpow.pop %v946
      %v948 = vmul.f32 %v918, 1.442695
      %v949 = vpow.pop %v948
      %v950 = vmul.f32 %v919, 1.442695
      %v951 = vpow.pop %v950
      %v952 = vsel %vm840, %v921, 0.0
      %v953 = vsel %vm841, %v923, 0.0
      %v954 = vsel %vm842, %v925, 0.0
      %v955 = vsel %vm843, %v927, 0.0
      %v956 = vsel %vm844, %v929, 0.0
      %v957 = vsel %vm845, %v931, 0.0
      %v958 = vsel %vm846, %v933, 0.0
      %v959 = vsel %vm847, %v935, 0.0
      %v960 = vsel %vm848, %v937, 0.0
      %v961 = vsel %vm849, %v939, 0.0
      %v962 = vsel %vm850, %v941, 0.0
      %v963 = vsel %vm851, %v943, 0.0
      %v964 = vsel %vm852, %v945, 0.0
      %v965 = vsel %vm853, %v947, 0.0
      %v966 = vsel %vm854, %v949, 0.0
      %v967 = vsel %vm855, %v951, 0.0
      %968 = vadd.xlane.f32.xlu0 %v952
      %v969 = vpop.xlane.xlu0 %968
      %970 = vadd.xlane.f32.xlu0 %v953
      %v971 = vpop.xlane.xlu0 %970
      %972 = vadd.xlane.f32.xlu0 %v954
      %v973 = vpop.xlane.xlu0 %972
      %974 = vadd.xlane.f32.xlu0 %v955
      %v975 = vpop.xlane.xlu0 %974
      %976 = vadd.xlane.f32.xlu0 %v956
      %v977 = vpop.xlane.xlu0 %976
      %978 = vadd.xlane.f32.xlu0 %v957
      %v979 = vpop.xlane.xlu0 %978
      %980 = vadd.xlane.f32.xlu0 %v958
      %v981 = vpop.xlane.xlu0 %980
      %982 = vadd.xlane.f32.xlu0 %v959
      %v983 = vpop.xlane.xlu0 %982
      %984 = vadd.xlane.f32.xlu0 %v960
      %v985 = vpop.xlane.xlu0 %984
      %986 = vadd.xlane.f32.xlu0 %v961
      %v987 = vpop.xlane.xlu0 %986
      %988 = vadd.xlane.f32.xlu0 %v962
      %v989 = vpop.xlane.xlu0 %988
      %990 = vadd.xlane.f32.xlu0 %v963
      %v991 = vpop.xlane.xlu0 %990
      %992 = vadd.xlane.f32.xlu0 %v964
      %v993 = vpop.xlane.xlu0 %992
      %994 = vadd.xlane.f32.xlu0 %v965
      %v995 = vpop.xlane.xlu0 %994
      %996 = vadd.xlane.f32.xlu0 %v966
      %v997 = vpop.xlane.xlu0 %996
      %998 = vadd.xlane.f32.xlu0 %v967
      %v999 = vpop.xlane.xlu0 %998
      %v1000 = vmax.f32 %v969, 1e-30
      %v1001 = vmax.f32 %v971, 1e-30
      %v1002 = vmax.f32 %v973, 1e-30
      %v1003 = vmax.f32 %v975, 1e-30
      %v1004 = vmax.f32 %v977, 1e-30
      %v1005 = vmax.f32 %v979, 1e-30
      %v1006 = vmax.f32 %v981, 1e-30
      %v1007 = vmax.f32 %v983, 1e-30
      %v1008 = vmax.f32 %v985, 1e-30
      %v1009 = vmax.f32 %v987, 1e-30
      %v1010 = vmax.f32 %v989, 1e-30
      %v1011 = vmax.f32 %v991, 1e-30
      %v1012 = vmax.f32 %v993, 1e-30
      %v1013 = vmax.f32 %v995, 1e-30
      %v1014 = vmax.f32 %v997, 1e-30
      %v1015 = vmax.f32 %v999, 1e-30
      %v1016 = vrcp.pop %v1000
      %v1017 = vrcp.pop %v1001
      %v1018 = vrcp.pop %v1002
      %v1019 = vrcp.pop %v1003
      %v1020 = vrcp.pop %v1004
      %v1021 = vrcp.pop %v1005
      %v1022 = vrcp.pop %v1006
      %v1023 = vrcp.pop %v1007
      %v1024 = vrcp.pop %v1008
      %v1025 = vrcp.pop %v1009
      %v1026 = vrcp.pop %v1010
      %v1027 = vrcp.pop %v1011
      %v1028 = vrcp.pop %v1012
      %v1029 = vrcp.pop %v1013
      %v1030 = vrcp.pop %v1014
      %v1031 = vrcp.pop %v1015
      %v1032 = vmul.f32 %v952, %v1016
      %v1033 = vmul.f32 %v953, %v1017
      %v1034 = vmul.f32 %v954, %v1018
      %v1035 = vmul.f32 %v955, %v1019
      %v1036 = vmul.f32 %v956, %v1020
      %v1037 = vmul.f32 %v957, %v1021
      %v1038 = vmul.f32 %v958, %v1022
      %v1039 = vmul.f32 %v959, %v1023
      %v1040 = vmul.f32 %v960, %v1024
      %v1041 = vmul.f32 %v961, %v1025
      %v1042 = vmul.f32 %v962, %v1026
      %v1043 = vmul.f32 %v963, %v1027
      %v1044 = vmul.f32 %v964, %v1028
      %v1045 = vmul.f32 %v965, %v1029
      %v1046 = vmul.f32 %v966, %v1030
      %v1047 = vmul.f32 %v967, %v1031
      %v1048 = vlaneseq
      %v1049 = vand.u32 %v1048, 127
      %vm1050 = vcmp.lt.s32.totalorder %v1049, 8
      %v1051 = vsel %vm1050, 1, 0
      %v1052 = vcvt.s32.f32 %v1051
      %v1053 = vmul.f32 %v514, %v1052
      %v1054 = vmul.f32 %v517, %v1052
      %v1055 = vmul.f32 %v522, %v1052
      %v1056 = vmul.f32 %v525, %v1052
      %v1057 = vmul.f32 %v530, %v1052
      %v1058 = vmul.f32 %v533, %v1052
      %v1059 = vmul.f32 %v538, %v1052
      %v1060 = vmul.f32 %v541, %v1052
      %v1061 = vmul.f32 %v546, %v1052
      %v1062 = vmul.f32 %v549, %v1052
      %v1063 = vmul.f32 %v554, %v1052
      %v1064 = vmul.f32 %v557, %v1052
      %v1065 = vmul.f32 %v562, %v1052
      %v1066 = vmul.f32 %v565, %v1052
      %v1067 = vmul.f32 %v570, %v1052
      %v1068 = vmul.f32 %v573, %v1052
      %v1069 = vpack.c.bf16 %v1033, %v1032
      %v1070 = vpack.c.bf16 %v1035, %v1034
      %v1071 = vpack.c.bf16 %v1037, %v1036
      %v1072 = vpack.c.bf16 %v1039, %v1038
      %v1073 = vpack.c.bf16 %v1041, %v1040
      %v1074 = vpack.c.bf16 %v1043, %v1042
      %v1075 = vpack.c.bf16 %v1045, %v1044
      %v1076 = vpack.c.bf16 %v1047, %v1046
      %v1077 = vpack.c.bf16 %v1054, %v1053
      %v1078 = vpack.c.bf16 %v1056, %v1055
      %v1079 = vpack.c.bf16 %v1058, %v1057
      %v1080 = vpack.c.bf16 %v1060, %v1059
      %v1081 = vpack.c.bf16 %v1062, %v1061
      %v1082 = vpack.c.bf16 %v1064, %v1063
      %v1083 = vpack.c.bf16 %v1066, %v1065
      %v1084 = vpack.c.bf16 %v1068, %v1067
      %v1085 = vld [vmem:[%s344] sm:$0x1]
      %v1087 = vlaneseq
      %v1088 = vshrl.u32 %v1087, 7
      %v1089 = vsub.s32 0, %v1088
      %v1090 = vrot.slane %v1085, %v1089
      %1092 = vmatprep.subr.bf16.mxu0 0
      %1093 = vmatpush1.bf16.msra.mxu0 %v1077
      %1094 = vmatprep.subr.bf16.mxu0 0
      %1095 = vmatpush1.bf16.msra.mxu0 %v1078
      %1096 = vmatprep.subr.bf16.mxu0 0
      %1097 = vmatpush1.bf16.msra.mxu0 %v1079
      %1098 = vmatprep.subr.bf16.mxu0 0
      %1099 = vmatpush1.bf16.msra.mxu0 %v1080
      %1100 = vmatprep.subr.bf16.mxu0 0
      %1101 = vmatpush1.bf16.msra.mxu0 %v1081
      %1102 = vmatprep.subr.bf16.mxu0 0
      %1103 = vmatpush1.bf16.msra.mxu0 %v1082
      %1104 = vmatprep.subr.bf16.mxu0 0
      %1105 = vmatpush1.bf16.msra.mxu0 %v1083
      %1106 = vmatprep.subr.bf16.mxu0 0
      %1107 = vmatpush1.bf16.msra.mxu0 %v1084
      %1108 = vmatprep.subr.bf16.mxu0 0
      %1109 = vmatpush1.bf16.msra.mxu0 0
      %1110 = vmatprep.subr.bf16.mxu0 0
      %1111 = vmatpush1.bf16.msra.mxu0 0
      %1112 = vmatprep.subr.bf16.mxu0 0
      %1113 = vmatpush1.bf16.msra.mxu0 0
      %1114 = vmatprep.subr.bf16.mxu0 0
      %1115 = vmatpush1.bf16.msra.mxu0 0
      %1116 = vmatprep.subr.bf16.mxu0 0
      %1117 = vmatpush1.bf16.msra.mxu0 0
      %1118 = vmatprep.subr.bf16.mxu0 0
      %1119 = vmatpush1.bf16.msra.mxu0 0
      %1120 = vmatprep.subr.bf16.mxu0 0
      %1121 = vmatpush1.bf16.msra.mxu0 0
      %1122 = vmatprep.subr.bf16.mxu0 0
      %1123 = vmatpush1.bf16.msra.mxu0 0
      %1124 = vmatprep.mubr.bf16.mxu0 0
      %1125 = vmatmul.mubr.bf16.gmra.mrb[0].mxu0 %v1069
      %v1126 = vpop.f32.mrb[0].mxu0
      %v1127 = vadd.f32 %v1090, %v1126
      %v1128 = vpop.f32.mrb[0].mxu0
      %v1129 = vpop.f32.mrb[0].mxu0
      %v1130 = vadd.f32 %v1090, %v1129
      %v1131 = vpop.f32.mrb[0].mxu0
      %1132 = vmatprep.mubr.bf16.mxu0 0
      %1133 = vmatmul.mubr.bf16.gmra.mrb[0].mxu0 %v1070
      %v1134 = vpop.f32.mrb[0].mxu0
      %v1135 = vadd.f32 %v1090, %v1134
      %v1136 = vpop.f32.mrb[0].mxu0
      %v1137 = vpop.f32.mrb[0].mxu0
      %v1138 = vadd.f32 %v1090, %v1137
      %v1139 = vpop.f32.mrb[0].mxu0
      %1140 = vmatprep.mubr.bf16.mxu0 0
      %1141 = vmatmul.mubr.bf16.gmra.mrb[0].mxu0 %v1071
      %v1142 = vpop.f32.mrb[0].mxu0
      %v1143 = vadd.f32 %v1090, %v1142
      %v1144 = vpop.f32.mrb[0].mxu0
      %v1145 = vpop.f32.mrb[0].mxu0
      %v1146 = vadd.f32 %v1090, %v1145
      %v1147 = vpop.f32.mrb[0].mxu0
      %1148 = vmatprep.mubr.bf16.mxu0 0
      %1149 = vmatmul.mubr.bf16.gmra.mrb[0].mxu0 %v1072
      %v1150 = vpop.f32.mrb[0].mxu0
      %v1151 = vadd.f32 %v1090, %v1150
      %v1152 = vpop.f32.mrb[0].mxu0
      %v1153 = vpop.f32.mrb[0].mxu0
      %v1154 = vadd.f32 %v1090, %v1153
      %v1155 = vpop.f32.mrb[0].mxu0
      %1156 = vmatprep.mubr.bf16.mxu0 0
      %1157 = vmatmul.mubr.bf16.gmra.mrb[0].mxu0 %v1073
      %v1158 = vpop.f32.mrb[0].mxu0
      %v1159 = vadd.f32 %v1090, %v1158
      %v1160 = vpop.f32.mrb[0].mxu0
      %v1161 = vpop.f32.mrb[0].mxu0
      %v1162 = vadd.f32 %v1090, %v1161
      %v1163 = vpop.f32.mrb[0].mxu0
      %1164 = vmatprep.mubr.bf16.mxu0 0
      %1165 = vmatmul.mubr.bf16.gmra.mrb[0].mxu0 %v1074
      %v1166 = vpop.f32.mrb[0].mxu0
      %v1167 = vadd.f32 %v1090, %v1166
      %v1168 = vpop.f32.mrb[0].mxu0
      %v1169 = vpop.f32.mrb[0].mxu0
      %v1170 = vadd.f32 %v1090, %v1169
      %v1171 = vpop.f32.mrb[0].mxu0
      %1172 = vmatprep.mubr.bf16.mxu0 0
      %1173 = vmatmul.mubr.bf16.gmra.mrb[0].mxu0 %v1075
      %v1174 = vpop.f32.mrb[0].mxu0
      %v1175 = vadd.f32 %v1090, %v1174
      %v1176 = vpop.f32.mrb[0].mxu0
      %v1177 = vpop.f32.mrb[0].mxu0
      %v1178 = vadd.f32 %v1090, %v1177
      %v1179 = vpop.f32.mrb[0].mxu0
      %1180 = vmatprep.mubr.bf16.mxu0 0
      %1181 = vmatmul.mubr.bf16.gmra.mrb[0].mxu0 %v1076
      %v1182 = vpop.f32.mrb[0].mxu0
      %v1183 = vadd.f32 %v1090, %v1182
      %v1184 = vpop.f32.mrb[0].mxu0
      %v1185 = vpop.f32.mrb[0].mxu0
      %v1186 = vadd.f32 %v1090, %v1185
      %v1187 = vpop.f32.mrb[0].mxu0
      %1188 = vdwg.mxu0
      %v1189 = vmax.f32 %v1127, 0.0
      %v1190 = vmax.f32 %v1130, 0.0
      %v1191 = vmax.f32 %v1135, 0.0
      %v1192 = vmax.f32 %v1138, 0.0
      %v1193 = vmax.f32 %v1143, 0.0
      %v1194 = vmax.f32 %v1146, 0.0
      %v1195 = vmax.f32 %v1151, 0.0
      %v1196 = vmax.f32 %v1154, 0.0
      %v1197 = vmax.f32 %v1159, 0.0
      %v1198 = vmax.f32 %v1162, 0.0
      %v1199 = vmax.f32 %v1167, 0.0
      %v1200 = vmax.f32 %v1170, 0.0
      %v1201 = vmax.f32 %v1175, 0.0
      %v1202 = vmax.f32 %v1178, 0.0
      %v1203 = vmax.f32 %v1183, 0.0
      %v1204 = vmax.f32 %v1186, 0.0
      %p1205 = scmp.eq.s32.totalorder %s21, 0
      // Predicated region
      $region53: #{gat_link_predict.1} parent=51 // pred_check
        %p1206 = pneg %p1205
      $region54: #{gat_link_predict.1} parent=51 // pred_check_branch
        %1208 = sbr.rel (%p1206) target = $region56
      $region55: #{gat_link_predict.1} parent=51 // pred_region
        %1209 = vst [vmem:[#allocation2] sm:$0xff] 0.0
        %1210 = vst [vmem:[#allocation2 + $0x8] sm:$0xff] 0.0
        %1211 = vst [vmem:[#allocation2 + $0x10] sm:$0xff] 0.0
        %1212 = vst [vmem:[#allocation2 + $0x18] sm:$0xff] 0.0
        %1213 = vst [vmem:[#allocation2 + $0x20] sm:$0xff] 0.0
        %1214 = vst [vmem:[#allocation2 + $0x28] sm:$0xff] 0.0
        %1215 = vst [vmem:[#allocation2 + $0x30] sm:$0xff] 0.0
        %1216 = vst [vmem:[#allocation2 + $0x38] sm:$0xff] 0.0
        %1217 = vst [vmem:[#allocation2 + $0x40] sm:$0xff] 0.0
        %1218 = vst [vmem:[#allocation2 + $0x48] sm:$0xff] 0.0
        %1219 = vst [vmem:[#allocation2 + $0x50] sm:$0xff] 0.0
        %1220 = vst [vmem:[#allocation2 + $0x58] sm:$0xff] 0.0
        %1221 = vst [vmem:[#allocation2 + $0x60] sm:$0xff] 0.0
        %1222 = vst [vmem:[#allocation2 + $0x68] sm:$0xff] 0.0
        %1223 = vst [vmem:[#allocation2 + $0x70] sm:$0xff] 0.0
        %1224 = vst [vmem:[#allocation2 + $0x78] sm:$0xff] 0.0
      $region56: #{gat_link_predict.1} parent=51 // pred_fallthru
        _
      %v1225 = vld [vmem:[#allocation2] sm:$0xff]
      %v1226 = vld [vmem:[#allocation2 + $0x8] sm:$0xff]
      %v1227 = vld [vmem:[#allocation2 + $0x10] sm:$0xff]
      %v1228 = vld [vmem:[#allocation2 + $0x18] sm:$0xff]
      %v1229 = vld [vmem:[#allocation2 + $0x20] sm:$0xff]
      %v1230 = vld [vmem:[#allocation2 + $0x28] sm:$0xff]
      %v1231 = vld [vmem:[#allocation2 + $0x30] sm:$0xff]
      %v1232 = vld [vmem:[#allocation2 + $0x38] sm:$0xff]
      %v1233 = vld [vmem:[#allocation2 + $0x40] sm:$0xff]
      %v1234 = vld [vmem:[#allocation2 + $0x48] sm:$0xff]
      %v1235 = vld [vmem:[#allocation2 + $0x50] sm:$0xff]
      %v1236 = vld [vmem:[#allocation2 + $0x58] sm:$0xff]
      %v1237 = vld [vmem:[#allocation2 + $0x60] sm:$0xff]
      %v1238 = vld [vmem:[#allocation2 + $0x68] sm:$0xff]
      %v1239 = vld [vmem:[#allocation2 + $0x70] sm:$0xff]
      %v1240 = vld [vmem:[#allocation2 + $0x78] sm:$0xff]
      %v1241 = vadd.f32 %v1225, %v1189
      %v1242 = vadd.f32 %v1226, %v1190
      %v1243 = vadd.f32 %v1227, %v1191
      %v1244 = vadd.f32 %v1228, %v1192
      %v1245 = vadd.f32 %v1229, %v1193
      %v1246 = vadd.f32 %v1230, %v1194
      %v1247 = vadd.f32 %v1231, %v1195
      %v1248 = vadd.f32 %v1232, %v1196
      %v1249 = vadd.f32 %v1233, %v1197
      %v1250 = vadd.f32 %v1234, %v1198
      %v1251 = vadd.f32 %v1235, %v1199
      %v1252 = vadd.f32 %v1236, %v1200
      %v1253 = vadd.f32 %v1237, %v1201
      %v1254 = vadd.f32 %v1238, %v1202
      %v1255 = vadd.f32 %v1239, %v1203
      %v1256 = vadd.f32 %v1240, %v1204
      %1257 = vst [vmem:[#allocation2] sm:$0xff] %v1241
      %1258 = vst [vmem:[#allocation2 + $0x8] sm:$0xff] %v1242
      %1259 = vst [vmem:[#allocation2 + $0x10] sm:$0xff] %v1243
      %1260 = vst [vmem:[#allocation2 + $0x18] sm:$0xff] %v1244
      %1261 = vst [vmem:[#allocation2 + $0x20] sm:$0xff] %v1245
      %1262 = vst [vmem:[#allocation2 + $0x28] sm:$0xff] %v1246
      %1263 = vst [vmem:[#allocation2 + $0x30] sm:$0xff] %v1247
      %1264 = vst [vmem:[#allocation2 + $0x38] sm:$0xff] %v1248
      %1265 = vst [vmem:[#allocation2 + $0x40] sm:$0xff] %v1249
      %1266 = vst [vmem:[#allocation2 + $0x48] sm:$0xff] %v1250
      %1267 = vst [vmem:[#allocation2 + $0x50] sm:$0xff] %v1251
      %1268 = vst [vmem:[#allocation2 + $0x58] sm:$0xff] %v1252
      %1269 = vst [vmem:[#allocation2 + $0x60] sm:$0xff] %v1253
      %1270 = vst [vmem:[#allocation2 + $0x68] sm:$0xff] %v1254
      %1271 = vst [vmem:[#allocation2 + $0x70] sm:$0xff] %v1255
      %1272 = vst [vmem:[#allocation2 + $0x78] sm:$0xff] %v1256
      %p1273 = scmp.eq.s32.totalorder %s21, 1
      // Predicated region
      $region57: #{gat_link_predict.1} parent=51 // pred_check
        %p1274 = pneg %p1273
      $region58: #{gat_link_predict.1} parent=51 // pred_check_branch
        %1276 = sbr.rel (%p1274) target = $region60
      $region59: #{gat_link_predict.1} parent=51 // pred_region
        %v1277 = vld [vmem:[#allocation2] sm:$0xff]
        %v1278 = vld [vmem:[#allocation2 + $0x8] sm:$0xff]
        %v1279 = vld [vmem:[#allocation2 + $0x10] sm:$0xff]
        %v1280 = vld [vmem:[#allocation2 + $0x18] sm:$0xff]
        %v1281 = vld [vmem:[#allocation2 + $0x20] sm:$0xff]
        %v1282 = vld [vmem:[#allocation2 + $0x28] sm:$0xff]
        %v1283 = vld [vmem:[#allocation2 + $0x30] sm:$0xff]
        %v1284 = vld [vmem:[#allocation2 + $0x38] sm:$0xff]
        %v1285 = vld [vmem:[#allocation2 + $0x40] sm:$0xff]
        %v1286 = vld [vmem:[#allocation2 + $0x48] sm:$0xff]
        %v1287 = vld [vmem:[#allocation2 + $0x50] sm:$0xff]
        %v1288 = vld [vmem:[#allocation2 + $0x58] sm:$0xff]
        %v1289 = vld [vmem:[#allocation2 + $0x60] sm:$0xff]
        %v1290 = vld [vmem:[#allocation2 + $0x68] sm:$0xff]
        %v1291 = vld [vmem:[#allocation2 + $0x70] sm:$0xff]
        %v1292 = vld [vmem:[#allocation2 + $0x78] sm:$0xff]
        %1293 = vmatprep.subr.mxu0 0.0
        %1294 = vmatpush1.xpose.msra.mxu0 %v1277
        %1295 = vmatprep.subr.mxu0 0.0
        %1296 = vmatpush1.xpose.msra.mxu0 %v1278
        %1297 = vmatprep.subr.mxu0 0.0
        %1298 = vmatpush1.xpose.msra.mxu0 %v1279
        %1299 = vmatprep.subr.mxu0 0.0
        %1300 = vmatpush1.xpose.msra.mxu0 %v1280
        %1301 = vmatprep.subr.mxu0 0.0
        %1302 = vmatpush1.xpose.msra.mxu0 %v1281
        %1303 = vmatprep.subr.mxu0 0.0
        %1304 = vmatpush1.xpose.msra.mxu0 %v1282
        %1305 = vmatprep.subr.mxu0 0.0
        %1306 = vmatpush1.xpose.msra.mxu0 %v1283
        %1307 = vmatprep.subr.mxu0 0.0
        %1308 = vmatpush1.xpose.msra.mxu0 %v1284
        %1309 = vmatprep.subr.mxu0 0.0
        %1310 = vmatpush1.xpose.msra.mxu0 %v1285
        %1311 = vmatprep.subr.mxu0 0.0
        %1312 = vmatpush1.xpose.msra.mxu0 %v1286
        %1313 = vmatprep.subr.mxu0 0.0
        %1314 = vmatpush1.xpose.msra.mxu0 %v1287
        %1315 = vmatprep.subr.mxu0 0.0
        %1316 = vmatpush1.xpose.msra.mxu0 %v1288
        %1317 = vmatprep.subr.mxu0 0.0
        %1318 = vmatpush1.xpose.msra.mxu0 %v1289
        %1319 = vmatprep.subr.mxu0 0.0
        %1320 = vmatpush1.xpose.msra.mxu0 %v1290
        %1321 = vmatprep.subr.mxu0 0.0
        %1322 = vmatpush1.xpose.msra.mxu0 %v1291
        %1323 = vmatprep.subr.mxu0 0.0
        %1324 = vmatpush1.xpose.msra.mxu0 %v1292
        %1325 = vmatprep.subr.mxu0 0.0
        %1326 = vmatpush1.xpose.msra.mxu0 0.0
        %1327 = vmatprep.subr.mxu0 0.0
        %1328 = vmatpush1.xpose.msra.mxu0 0.0
        %1329 = vmatprep.subr.mxu0 0.0
        %1330 = vmatpush1.xpose.msra.mxu0 0.0
        %1331 = vmatprep.subr.mxu0 0.0
        %1332 = vmatpush1.xpose.msra.mxu0 0.0
        %1333 = vmatprep.subr.mxu0 0.0
        %1334 = vmatpush1.xpose.msra.mxu0 0.0
        %1335 = vmatprep.subr.mxu0 0.0
        %1336 = vmatpush1.xpose.msra.mxu0 0.0
        %1337 = vmatprep.subr.mxu0 0.0
        %1338 = vmatpush1.xpose.msra.mxu0 0.0
        %1339 = vmatprep.subr.mxu0 0.0
        %1340 = vmatpush1.xpose.msra.mxu0 0.0
        %1341 = vmatprep.subr.mxu0 0.0
        %1342 = vmatpush1.xpose.msra.mxu0 0.0
        %1343 = vmatprep.subr.mxu0 0.0
        %1344 = vmatpush1.xpose.msra.mxu0 0.0
        %1345 = vmatprep.subr.mxu0 0.0
        %1346 = vmatpush1.xpose.msra.mxu0 0.0
        %1347 = vmatprep.subr.mxu0 0.0
        %1348 = vmatpush1.xpose.msra.mxu0 0.0
        %1349 = vmatprep.subr.mxu0 0.0
        %1350 = vmatpush1.xpose.msra.mxu0 0.0
        %1351 = vmatprep.subr.mxu0 0.0
        %1352 = vmatpush1.xpose.msra.mxu0 0.0
        %1353 = vmatprep.subr.mxu0 0.0
        %1354 = vmatpush1.xpose.msra.mxu0 0.0
        %1355 = vmatprep.subr.mxu0 0.0
        %1356 = vmatpush1.xpose.msra.mxu0 0.0
        %1357 = vmatprep.mubr.f32.mxu0 0.0
        %1358 = vmatmul.mubr.f32.gmra.mrb[0].mxu0 %v1277
        %v1359 = vpop.f32.mrb[0].mxu0
        %v1360 = vadd.f32 0.0, %v1359
        %v1361 = vpop.f32.mrb[0].mxu0
        %1362 = vmatprep.mubr.f32.mxu0 0.0
        %1363 = vmatmul.mubr.f32.gmra.mrb[0].mxu0 %v1278
        %v1364 = vpop.f32.mrb[0].mxu0
        %v1365 = vadd.f32 0.0, %v1364
        %v1366 = vpop.f32.mrb[0].mxu0
        %1367 = vmatprep.mubr.f32.mxu0 0.0
        %1368 = vmatmul.mubr.f32.gmra.mrb[0].mxu0 %v1279
        %v1369 = vpop.f32.mrb[0].mxu0
        %v1370 = vadd.f32 0.0, %v1369
        %v1371 = vpop.f32.mrb[0].mxu0
        %1372 = vmatprep.mubr.f32.mxu0 0.0
        %1373 = vmatmul.mubr.f32.gmra.mrb[0].mxu0 %v1280
        %v1374 = vpop.f32.mrb[0].mxu0
        %v1375 = vadd.f32 0.0, %v1374
        %v1376 = vpop.f32.mrb[0].mxu0
        %1377 = vmatprep.mubr.f32.mxu0 0.0
        %1378 = vmatmul.mubr.f32.gmra.mrb[0].mxu0 %v1281
        %v1379 = vpop.f32.mrb[0].mxu0
        %v1380 = vadd.f32 0.0, %v1379
        %v1381 = vpop.f32.mrb[0].mxu0
        %1382 = vmatprep.mubr.f32.mxu0 0.0
        %1383 = vmatmul.mubr.f32.gmra.mrb[0].mxu0 %v1282
        %v1384 = vpop.f32.mrb[0].mxu0
        %v1385 = vadd.f32 0.0, %v1384
        %v1386 = vpop.f32.mrb[0].mxu0
        %1387 = vmatprep.mubr.f32.mxu0 0.0
        %1388 = vmatmul.mubr.f32.gmra.mrb[0].mxu0 %v1283
        %v1389 = vpop.f32.mrb[0].mxu0
        %v1390 = vadd.f32 0.0, %v1389
        %v1391 = vpop.f32.mrb[0].mxu0
        %1392 = vmatprep.mubr.f32.mxu0 0.0
        %1393 = vmatmul.mubr.f32.gmra.mrb[0].mxu0 %v1284
        %v1394 = vpop.f32.mrb[0].mxu0
        %v1395 = vadd.f32 0.0, %v1394
        %v1396 = vpop.f32.mrb[0].mxu0
        %1397 = vmatprep.mubr.f32.mxu0 0.0
        %1398 = vmatmul.mubr.f32.gmra.mrb[0].mxu0 %v1285
        %v1399 = vpop.f32.mrb[0].mxu0
        %v1400 = vadd.f32 0.0, %v1399
        %v1401 = vpop.f32.mrb[0].mxu0
        %1402 = vmatprep.mubr.f32.mxu0 0.0
        %1403 = vmatmul.mubr.f32.gmra.mrb[0].mxu0 %v1286
        %v1404 = vpop.f32.mrb[0].mxu0
        %v1405 = vadd.f32 0.0, %v1404
        %v1406 = vpop.f32.mrb[0].mxu0
        %1407 = vmatprep.mubr.f32.mxu0 0.0
        %1408 = vmatmul.mubr.f32.gmra.mrb[0].mxu0 %v1287
        %v1409 = vpop.f32.mrb[0].mxu0
        %v1410 = vadd.f32 0.0, %v1409
        %v1411 = vpop.f32.mrb[0].mxu0
        %1412 = vmatprep.mubr.f32.mxu0 0.0
        %1413 = vmatmul.mubr.f32.gmra.mrb[0].mxu0 %v1288
        %v1414 = vpop.f32.mrb[0].mxu0
        %v1415 = vadd.f32 0.0, %v1414
        %v1416 = vpop.f32.mrb[0].mxu0
        %1417 = vmatprep.mubr.f32.mxu0 0.0
        %1418 = vmatmul.mubr.f32.gmra.mrb[0].mxu0 %v1289
        %v1419 = vpop.f32.mrb[0].mxu0
        %v1420 = vadd.f32 0.0, %v1419
        %v1421 = vpop.f32.mrb[0].mxu0
        %1422 = vmatprep.mubr.f32.mxu0 0.0
        %1423 = vmatmul.mubr.f32.gmra.mrb[0].mxu0 %v1290
        %v1424 = vpop.f32.mrb[0].mxu0
        %v1425 = vadd.f32 0.0, %v1424
        %v1426 = vpop.f32.mrb[0].mxu0
        %1427 = vmatprep.mubr.f32.mxu0 0.0
        %1428 = vmatmul.mubr.f32.gmra.mrb[0].mxu0 %v1291
        %v1429 = vpop.f32.mrb[0].mxu0
        %v1430 = vadd.f32 0.0, %v1429
        %v1431 = vpop.f32.mrb[0].mxu0
        %1432 = vmatprep.mubr.f32.mxu0 0.0
        %1433 = vmatmul.mubr.f32.gmra.mrb[0].mxu0 %v1292
        %v1434 = vpop.f32.mrb[0].mxu0
        %v1435 = vadd.f32 0.0, %v1434
        %v1436 = vpop.f32.mrb[0].mxu0
        %1437 = vdwg.mxu0
        %v1438 = vlaneseq
        %v1439 = vshrl.u32 %v1438, 7
        %v1440 = vadd.s32 %v1439, 8
        %v1441 = vadd.s32 %v1439, 16
        %v1442 = vadd.s32 %v1439, 24
        %v1443 = vadd.s32 %v1439, 32
        %v1444 = vadd.s32 %v1439, 40
        %v1445 = vadd.s32 %v1439, 48
        %v1446 = vadd.s32 %v1439, 56
        %v1447 = vadd.s32 %v1439, 64
        %v1448 = vadd.s32 %v1439, 72
        %v1449 = vadd.s32 %v1439, 80
        %v1450 = vadd.s32 %v1439, 88
        %v1451 = vadd.s32 %v1439, 96
        %v1452 = vadd.s32 %v1439, 104
        %v1453 = vadd.s32 %v1439, 112
        %v1454 = vadd.s32 %v1439, 120
        %v1455 = vld [vmem:[%s4] sm:$0x1]
        %v1456 = vld [vmem:[%s5] sm:$0x1]
        %v1457 = vlaneseq
        %v1458 = vshrl.u32 %v1457, 7
        %v1459 = vsub.s32 0, %v1458
        %v1460 = vrot.slane %v1455, %v1459
        %vm1461 = vcmp.eq.s32.totalorder %v1439, %v1460
        %vm1462 = vcmp.eq.s32.totalorder %v1440, %v1460
        %vm1463 = vcmp.eq.s32.totalorder %v1441, %v1460
        %vm1464 = vcmp.eq.s32.totalorder %v1442, %v1460
        %vm1465 = vcmp.eq.s32.totalorder %v1443, %v1460
        %vm1466 = vcmp.eq.s32.totalorder %v1444, %v1460
        %vm1467 = vcmp.eq.s32.totalorder %v1445, %v1460
        %vm1468 = vcmp.eq.s32.totalorder %v1446, %v1460
        %vm1469 = vcmp.eq.s32.totalorder %v1447, %v1460
        %vm1470 = vcmp.eq.s32.totalorder %v1448, %v1460
        %vm1471 = vcmp.eq.s32.totalorder %v1449, %v1460
        %vm1472 = vcmp.eq.s32.totalorder %v1450, %v1460
        %vm1473 = vcmp.eq.s32.totalorder %v1451, %v1460
        %vm1474 = vcmp.eq.s32.totalorder %v1452, %v1460
        %vm1475 = vcmp.eq.s32.totalorder %v1453, %v1460
        %vm1476 = vcmp.eq.s32.totalorder %v1454, %v1460
        %v1477 = vsel %vm1461, 1, 0
        %v1478 = vsel %vm1462, 1, 0
        %v1479 = vsel %vm1463, 1, 0
        %v1480 = vsel %vm1464, 1, 0
        %v1481 = vsel %vm1465, 1, 0
        %v1482 = vsel %vm1466, 1, 0
        %v1483 = vsel %vm1467, 1, 0
        %v1484 = vsel %vm1468, 1, 0
        %v1485 = vsel %vm1469, 1, 0
        %v1486 = vsel %vm1470, 1, 0
        %v1487 = vsel %vm1471, 1, 0
        %v1488 = vsel %vm1472, 1, 0
        %v1489 = vsel %vm1473, 1, 0
        %v1490 = vsel %vm1474, 1, 0
        %v1491 = vsel %vm1475, 1, 0
        %v1492 = vsel %vm1476, 1, 0
        %v1493 = vcvt.s32.f32 %v1477
        %v1494 = vcvt.s32.f32 %v1478
        %v1495 = vcvt.s32.f32 %v1479
        %v1496 = vcvt.s32.f32 %v1480
        %v1497 = vcvt.s32.f32 %v1481
        %v1498 = vcvt.s32.f32 %v1482
        %v1499 = vcvt.s32.f32 %v1483
        %v1500 = vcvt.s32.f32 %v1484
        %v1501 = vcvt.s32.f32 %v1485
        %v1502 = vcvt.s32.f32 %v1486
        %v1503 = vcvt.s32.f32 %v1487
        %v1504 = vcvt.s32.f32 %v1488
        %v1505 = vcvt.s32.f32 %v1489
        %v1506 = vcvt.s32.f32 %v1490
        %v1507 = vcvt.s32.f32 %v1491
        %v1508 = vcvt.s32.f32 %v1492
        %v1509 = vlaneseq
        %v1510 = vshrl.u32 %v1509, 7
        %v1511 = vsub.s32 0, %v1510
        %v1512 = vrot.slane %v1456, %v1511
        %vm1513 = vcmp.eq.s32.totalorder %v1439, %v1512
        %vm1514 = vcmp.eq.s32.totalorder %v1440, %v1512
        %vm1515 = vcmp.eq.s32.totalorder %v1441, %v1512
        %vm1516 = vcmp.eq.s32.totalorder %v1442, %v1512
        %vm1517 = vcmp.eq.s32.totalorder %v1443, %v1512
        %vm1518 = vcmp.eq.s32.totalorder %v1444, %v1512
        %vm1519 = vcmp.eq.s32.totalorder %v1445, %v1512
        %vm1520 = vcmp.eq.s32.totalorder %v1446, %v1512
        %vm1521 = vcmp.eq.s32.totalorder %v1447, %v1512
        %vm1522 = vcmp.eq.s32.totalorder %v1448, %v1512
        %vm1523 = vcmp.eq.s32.totalorder %v1449, %v1512
        %vm1524 = vcmp.eq.s32.totalorder %v1450, %v1512
        %vm1525 = vcmp.eq.s32.totalorder %v1451, %v1512
        %vm1526 = vcmp.eq.s32.totalorder %v1452, %v1512
        %vm1527 = vcmp.eq.s32.totalorder %v1453, %v1512
        %vm1528 = vcmp.eq.s32.totalorder %v1454, %v1512
        %v1529 = vsel %vm1513, 1, 0
        %v1530 = vsel %vm1514, 1, 0
        %v1531 = vsel %vm1515, 1, 0
        %v1532 = vsel %vm1516, 1, 0
        %v1533 = vsel %vm1517, 1, 0
        %v1534 = vsel %vm1518, 1, 0
        %v1535 = vsel %vm1519, 1, 0
        %v1536 = vsel %vm1520, 1, 0
        %v1537 = vsel %vm1521, 1, 0
        %v1538 = vsel %vm1522, 1, 0
        %v1539 = vsel %vm1523, 1, 0
        %v1540 = vsel %vm1524, 1, 0
        %v1541 = vsel %vm1525, 1, 0
        %v1542 = vsel %vm1526, 1, 0
        %v1543 = vsel %vm1527, 1, 0
        %v1544 = vsel %vm1528, 1, 0
        %v1545 = vcvt.s32.f32 %v1529
        %v1546 = vcvt.s32.f32 %v1530
        %v1547 = vcvt.s32.f32 %v1531
        %v1548 = vcvt.s32.f32 %v1532
        %v1549 = vcvt.s32.f32 %v1533
        %v1550 = vcvt.s32.f32 %v1534
        %v1551 = vcvt.s32.f32 %v1535
        %v1552 = vcvt.s32.f32 %v1536
        %v1553 = vcvt.s32.f32 %v1537
        %v1554 = vcvt.s32.f32 %v1538
        %v1555 = vcvt.s32.f32 %v1539
        %v1556 = vcvt.s32.f32 %v1540
        %v1557 = vcvt.s32.f32 %v1541
        %v1558 = vcvt.s32.f32 %v1542
        %v1559 = vcvt.s32.f32 %v1543
        %v1560 = vcvt.s32.f32 %v1544
        %1561 = vmatprep.subr.mxu0 0.0
        %1562 = vmatpush1.msra.mxu0 %v1545
        %1563 = vmatprep.subr.mxu0 0.0
        %1564 = vmatpush1.msra.mxu0 %v1546
        %1565 = vmatprep.subr.mxu0 0.0
        %1566 = vmatpush1.msra.mxu0 %v1547
        %1567 = vmatprep.subr.mxu0 0.0
        %1568 = vmatpush1.msra.mxu0 %v1548
        %1569 = vmatprep.subr.mxu0 0.0
        %1570 = vmatpush1.msra.mxu0 %v1549
        %1571 = vmatprep.subr.mxu0 0.0
        %1572 = vmatpush1.msra.mxu0 %v1550
        %1573 = vmatprep.subr.mxu0 0.0
        %1574 = vmatpush1.msra.mxu0 %v1551
        %1575 = vmatprep.subr.mxu0 0.0
        %1576 = vmatpush1.msra.mxu0 %v1552
        %1577 = vmatprep.subr.mxu0 0.0
        %1578 = vmatpush1.msra.mxu0 %v1553
        %1579 = vmatprep.subr.mxu0 0.0
        %1580 = vmatpush1.msra.mxu0 %v1554
        %1581 = vmatprep.subr.mxu0 0.0
        %1582 = vmatpush1.msra.mxu0 %v1555
        %1583 = vmatprep.subr.mxu0 0.0
        %1584 = vmatpush1.msra.mxu0 %v1556
        %1585 = vmatprep.subr.mxu0 0.0
        %1586 = vmatpush1.msra.mxu0 %v1557
        %1587 = vmatprep.subr.mxu0 0.0
        %1588 = vmatpush1.msra.mxu0 %v1558
        %1589 = vmatprep.subr.mxu0 0.0
        %1590 = vmatpush1.msra.mxu0 %v1559
        %1591 = vmatprep.subr.mxu0 0.0
        %1592 = vmatpush1.msra.mxu0 %v1560
        %1593 = vmatprep.subr.mxu0 0.0
        %1594 = vmatpush1.msra.mxu0 0.0
        %1595 = vmatprep.subr.mxu0 0.0
        %1596 = vmatpush1.msra.mxu0 0.0
        %1597 = vmatprep.subr.mxu0 0.0
        %1598 = vmatpush1.msra.mxu0 0.0
        %1599 = vmatprep.subr.mxu0 0.0
        %1600 = vmatpush1.msra.mxu0 0.0
        %1601 = vmatprep.subr.mxu0 0.0
        %1602 = vmatpush1.msra.mxu0 0.0
        %1603 = vmatprep.subr.mxu0 0.0
        %1604 = vmatpush1.msra.mxu0 0.0
        %1605 = vmatprep.subr.mxu0 0.0
        %1606 = vmatpush1.msra.mxu0 0.0
        %1607 = vmatprep.subr.mxu0 0.0
        %1608 = vmatpush1.msra.mxu0 0.0
        %1609 = vmatprep.subr.mxu0 0.0
        %1610 = vmatpush1.msra.mxu0 0.0
        %1611 = vmatprep.subr.mxu0 0.0
        %1612 = vmatpush1.msra.mxu0 0.0
        %1613 = vmatprep.subr.mxu0 0.0
        %1614 = vmatpush1.msra.mxu0 0.0
        %1615 = vmatprep.subr.mxu0 0.0
        %1616 = vmatpush1.msra.mxu0 0.0
        %1617 = vmatprep.subr.mxu0 0.0
        %1618 = vmatpush1.msra.mxu0 0.0
        %1619 = vmatprep.subr.mxu0 0.0
        %1620 = vmatpush1.msra.mxu0 0.0
        %1621 = vmatprep.subr.mxu0 0.0
        %1622 = vmatpush1.msra.mxu0 0.0
        %1623 = vmatprep.subr.mxu0 0.0
        %1624 = vmatpush1.msra.mxu0 0.0
        %1625 = vmatprep.mubr.f32.mxu0 0.0
        %1626 = vmatmul.mubr.f32.gmra.mrb[0].mxu0 %v1360
        %v1627 = vpop.f32.mrb[0].mxu0
        %v1628 = vadd.f32 0.0, %v1627
        %v1629 = vpop.f32.mrb[0].mxu0
        %1630 = vmatprep.mubr.f32.mxu0 0.0
        %1631 = vmatmul.mubr.f32.gmra.mrb[0].mxu0 %v1365
        %v1632 = vpop.f32.mrb[0].mxu0
        %v1633 = vadd.f32 0.0, %v1632
        %v1634 = vpop.f32.mrb[0].mxu0
        %1635 = vmatprep.mubr.f32.mxu0 0.0
        %1636 = vmatmul.mubr.f32.gmra.mrb[0].mxu0 %v1370
        %v1637 = vpop.f32.mrb[0].mxu0
        %v1638 = vadd.f32 0.0, %v1637
        %v1639 = vpop.f32.mrb[0].mxu0
        %1640 = vmatprep.mubr.f32.mxu0 0.0
        %1641 = vmatmul.mubr.f32.gmra.mrb[0].mxu0 %v1375
        %v1642 = vpop.f32.mrb[0].mxu0
        %v1643 = vadd.f32 0.0, %v1642
        %v1644 = vpop.f32.mrb[0].mxu0
        %1645 = vmatprep.mubr.f32.mxu0 0.0
        %1646 = vmatmul.mubr.f32.gmra.mrb[0].mxu0 %v1380
        %v1647 = vpop.f32.mrb[0].mxu0
        %v1648 = vadd.f32 0.0, %v1647
        %v1649 = vpop.f32.mrb[0].mxu0
        %1650 = vmatprep.mubr.f32.mxu0 0.0
        %1651 = vmatmul.mubr.f32.gmra.mrb[0].mxu0 %v1385
        %v1652 = vpop.f32.mrb[0].mxu0
        %v1653 = vadd.f32 0.0, %v1652
        %v1654 = vpop.f32.mrb[0].mxu0
        %1655 = vmatprep.mubr.f32.mxu0 0.0
        %1656 = vmatmul.mubr.f32.gmra.mrb[0].mxu0 %v1390
        %v1657 = vpop.f32.mrb[0].mxu0
        %v1658 = vadd.f32 0.0, %v1657
        %v1659 = vpop.f32.mrb[0].mxu0
        %1660 = vmatprep.mubr.f32.mxu0 0.0
        %1661 = vmatmul.mubr.f32.gmra.mrb[0].mxu0 %v1395
        %v1662 = vpop.f32.mrb[0].mxu0
        %v1663 = vadd.f32 0.0, %v1662
        %v1664 = vpop.f32.mrb[0].mxu0
        %1665 = vmatprep.mubr.f32.mxu0 0.0
        %1666 = vmatmul.mubr.f32.gmra.mrb[0].mxu0 %v1400
        %v1667 = vpop.f32.mrb[0].mxu0
        %v1668 = vadd.f32 0.0, %v1667
        %v1669 = vpop.f32.mrb[0].mxu0
        %1670 = vmatprep.mubr.f32.mxu0 0.0
        %1671 = vmatmul.mubr.f32.gmra.mrb[0].mxu0 %v1405
        %v1672 = vpop.f32.mrb[0].mxu0
        %v1673 = vadd.f32 0.0, %v1672
        %v1674 = vpop.f32.mrb[0].mxu0
        %1675 = vmatprep.mubr.f32.mxu0 0.0
        %1676 = vmatmul.mubr.f32.gmra.mrb[0].mxu0 %v1410
        %v1677 = vpop.f32.mrb[0].mxu0
        %v1678 = vadd.f32 0.0, %v1677
        %v1679 = vpop.f32.mrb[0].mxu0
        %1680 = vmatprep.mubr.f32.mxu0 0.0
        %1681 = vmatmul.mubr.f32.gmra.mrb[0].mxu0 %v1415
        %v1682 = vpop.f32.mrb[0].mxu0
        %v1683 = vadd.f32 0.0, %v1682
        %v1684 = vpop.f32.mrb[0].mxu0
        %1685 = vmatprep.mubr.f32.mxu0 0.0
        %1686 = vmatmul.mubr.f32.gmra.mrb[0].mxu0 %v1420
        %v1687 = vpop.f32.mrb[0].mxu0
        %v1688 = vadd.f32 0.0, %v1687
        %v1689 = vpop.f32.mrb[0].mxu0
        %1690 = vmatprep.mubr.f32.mxu0 0.0
        %1691 = vmatmul.mubr.f32.gmra.mrb[0].mxu0 %v1425
        %v1692 = vpop.f32.mrb[0].mxu0
        %v1693 = vadd.f32 0.0, %v1692
        %v1694 = vpop.f32.mrb[0].mxu0
        %1695 = vmatprep.mubr.f32.mxu0 0.0
        %1696 = vmatmul.mubr.f32.gmra.mrb[0].mxu0 %v1430
        %v1697 = vpop.f32.mrb[0].mxu0
        %v1698 = vadd.f32 0.0, %v1697
        %v1699 = vpop.f32.mrb[0].mxu0
        %1700 = vmatprep.mubr.f32.mxu0 0.0
        %1701 = vmatmul.mubr.f32.gmra.mrb[0].mxu0 %v1435
        %v1702 = vpop.f32.mrb[0].mxu0
        %v1703 = vadd.f32 0.0, %v1702
        %v1704 = vpop.f32.mrb[0].mxu0
        %1705 = vdwg.mxu0
        %v1706 = vmul.f32 %v1493, %v1628
        %v1707 = vmul.f32 %v1494, %v1633
        %v1708 = vmul.f32 %v1495, %v1638
        %v1709 = vmul.f32 %v1496, %v1643
        %v1710 = vmul.f32 %v1497, %v1648
        %v1711 = vmul.f32 %v1498, %v1653
        %v1712 = vmul.f32 %v1499, %v1658
        %v1713 = vmul.f32 %v1500, %v1663
        %v1714 = vmul.f32 %v1501, %v1668
        %v1715 = vmul.f32 %v1502, %v1673
        %v1716 = vmul.f32 %v1503, %v1678
        %v1717 = vmul.f32 %v1504, %v1683
        %v1718 = vmul.f32 %v1505, %v1688
        %v1719 = vmul.f32 %v1506, %v1693
        %v1720 = vmul.f32 %v1507, %v1698
        %v1721 = vmul.f32 %v1508, %v1703
        %v1722 = vadd.f32 %v1706, %v1707
        %v1723 = vadd.f32 %v1722, %v1708
        %v1724 = vadd.f32 %v1723, %v1709
        %v1725 = vadd.f32 %v1724, %v1710
        %v1726 = vadd.f32 %v1725, %v1711
        %v1727 = vadd.f32 %v1726, %v1712
        %v1728 = vadd.f32 %v1727, %v1713
        %v1729 = vadd.f32 %v1728, %v1714
        %v1730 = vadd.f32 %v1729, %v1715
        %v1731 = vadd.f32 %v1730, %v1716
        %v1732 = vadd.f32 %v1731, %v1717
        %v1733 = vadd.f32 %v1732, %v1718
        %v1734 = vadd.f32 %v1733, %v1719
        %v1735 = vadd.f32 %v1734, %v1720
        %v1736 = vadd.f32 %v1735, %v1721
        %v1737 = vrot.slane %v1736, 4
        %v1738 = vadd.f32 %v1736, %v1737
        %v1739 = vrot.slane %v1738, 2
        %v1740 = vadd.f32 %v1738, %v1739
        %v1741 = vrot.slane %v1740, 1
        %v1742 = vadd.f32 %v1740, %v1741
        %1743 = vst [vmem:[%s8] sm:$0x1] %v1742
        %v1744 = vld [vmem:[%s6] sm:$0x1]
        %v1745 = vld [vmem:[%s7] sm:$0x1]
        %v1746 = vlaneseq
        %v1747 = vshrl.u32 %v1746, 7
        %v1748 = vsub.s32 0, %v1747
        %v1749 = vrot.slane %v1744, %v1748
        %vm1750 = vcmp.eq.s32.totalorder %v1439, %v1749
        %vm1751 = vcmp.eq.s32.totalorder %v1440, %v1749
        %vm1752 = vcmp.eq.s32.totalorder %v1441, %v1749
        %vm1753 = vcmp.eq.s32.totalorder %v1442, %v1749
        %vm1754 = vcmp.eq.s32.totalorder %v1443, %v1749
        %vm1755 = vcmp.eq.s32.totalorder %v1444, %v1749
        %vm1756 = vcmp.eq.s32.totalorder %v1445, %v1749
        %vm1757 = vcmp.eq.s32.totalorder %v1446, %v1749
        %vm1758 = vcmp.eq.s32.totalorder %v1447, %v1749
        %vm1759 = vcmp.eq.s32.totalorder %v1448, %v1749
        %vm1760 = vcmp.eq.s32.totalorder %v1449, %v1749
        %vm1761 = vcmp.eq.s32.totalorder %v1450, %v1749
        %vm1762 = vcmp.eq.s32.totalorder %v1451, %v1749
        %vm1763 = vcmp.eq.s32.totalorder %v1452, %v1749
        %vm1764 = vcmp.eq.s32.totalorder %v1453, %v1749
        %vm1765 = vcmp.eq.s32.totalorder %v1454, %v1749
        %v1766 = vsel %vm1750, 1, 0
        %v1767 = vsel %vm1751, 1, 0
        %v1768 = vsel %vm1752, 1, 0
        %v1769 = vsel %vm1753, 1, 0
        %v1770 = vsel %vm1754, 1, 0
        %v1771 = vsel %vm1755, 1, 0
        %v1772 = vsel %vm1756, 1, 0
        %v1773 = vsel %vm1757, 1, 0
        %v1774 = vsel %vm1758, 1, 0
        %v1775 = vsel %vm1759, 1, 0
        %v1776 = vsel %vm1760, 1, 0
        %v1777 = vsel %vm1761, 1, 0
        %v1778 = vsel %vm1762, 1, 0
        %v1779 = vsel %vm1763, 1, 0
        %v1780 = vsel %vm1764, 1, 0
        %v1781 = vsel %vm1765, 1, 0
        %v1782 = vcvt.s32.f32 %v1766
        %v1783 = vcvt.s32.f32 %v1767
        %v1784 = vcvt.s32.f32 %v1768
        %v1785 = vcvt.s32.f32 %v1769
        %v1786 = vcvt.s32.f32 %v1770
        %v1787 = vcvt.s32.f32 %v1771
        %v1788 = vcvt.s32.f32 %v1772
        %v1789 = vcvt.s32.f32 %v1773
        %v1790 = vcvt.s32.f32 %v1774
        %v1791 = vcvt.s32.f32 %v1775
        %v1792 = vcvt.s32.f32 %v1776
        %v1793 = vcvt.s32.f32 %v1777
        %v1794 = vcvt.s32.f32 %v1778
        %v1795 = vcvt.s32.f32 %v1779
        %v1796 = vcvt.s32.f32 %v1780
        %v1797 = vcvt.s32.f32 %v1781
        %v1798 = vlaneseq
        %v1799 = vshrl.u32 %v1798, 7
        %v1800 = vsub.s32 0, %v1799
        %v1801 = vrot.slane %v1745, %v1800
        %vm1802 = vcmp.eq.s32.totalorder %v1439, %v1801
        %vm1803 = vcmp.eq.s32.totalorder %v1440, %v1801
        %vm1804 = vcmp.eq.s32.totalorder %v1441, %v1801
        %vm1805 = vcmp.eq.s32.totalorder %v1442, %v1801
        %vm1806 = vcmp.eq.s32.totalorder %v1443, %v1801
        %vm1807 = vcmp.eq.s32.totalorder %v1444, %v1801
        %vm1808 = vcmp.eq.s32.totalorder %v1445, %v1801
        %vm1809 = vcmp.eq.s32.totalorder %v1446, %v1801
        %vm1810 = vcmp.eq.s32.totalorder %v1447, %v1801
        %vm1811 = vcmp.eq.s32.totalorder %v1448, %v1801
        %vm1812 = vcmp.eq.s32.totalorder %v1449, %v1801
        %vm1813 = vcmp.eq.s32.totalorder %v1450, %v1801
        %vm1814 = vcmp.eq.s32.totalorder %v1451, %v1801
        %vm1815 = vcmp.eq.s32.totalorder %v1452, %v1801
        %vm1816 = vcmp.eq.s32.totalorder %v1453, %v1801
        %vm1817 = vcmp.eq.s32.totalorder %v1454, %v1801
        %v1818 = vsel %vm1802, 1, 0
        %v1819 = vsel %vm1803, 1, 0
        %v1820 = vsel %vm1804, 1, 0
        %v1821 = vsel %vm1805, 1, 0
        %v1822 = vsel %vm1806, 1, 0
        %v1823 = vsel %vm1807, 1, 0
        %v1824 = vsel %vm1808, 1, 0
        %v1825 = vsel %vm1809, 1, 0
        %v1826 = vsel %vm1810, 1, 0
        %v1827 = vsel %vm1811, 1, 0
        %v1828 = vsel %vm1812, 1, 0
        %v1829 = vsel %vm1813, 1, 0
        %v1830 = vsel %vm1814, 1, 0
        %v1831 = vsel %vm1815, 1, 0
        %v1832 = vsel %vm1816, 1, 0
        %v1833 = vsel %vm1817, 1, 0
        %v1834 = vcvt.s32.f32 %v1818
        %v1835 = vcvt.s32.f32 %v1819
        %v1836 = vcvt.s32.f32 %v1820
        %v1837 = vcvt.s32.f32 %v1821
        %v1838 = vcvt.s32.f32 %v1822
        %v1839 = vcvt.s32.f32 %v1823
        %v1840 = vcvt.s32.f32 %v1824
        %v1841 = vcvt.s32.f32 %v1825
        %v1842 = vcvt.s32.f32 %v1826
        %v1843 = vcvt.s32.f32 %v1827
        %v1844 = vcvt.s32.f32 %v1828
        %v1845 = vcvt.s32.f32 %v1829
        %v1846 = vcvt.s32.f32 %v1830
        %v1847 = vcvt.s32.f32 %v1831
        %v1848 = vcvt.s32.f32 %v1832
        %v1849 = vcvt.s32.f32 %v1833
        %1850 = vmatprep.subr.mxu0 0.0
        %1851 = vmatpush1.msra.mxu0 %v1834
        %1852 = vmatprep.subr.mxu0 0.0
        %1853 = vmatpush1.msra.mxu0 %v1835
        %1854 = vmatprep.subr.mxu0 0.0
        %1855 = vmatpush1.msra.mxu0 %v1836
        %1856 = vmatprep.subr.mxu0 0.0
        %1857 = vmatpush1.msra.mxu0 %v1837
        %1858 = vmatprep.subr.mxu0 0.0
        %1859 = vmatpush1.msra.mxu0 %v1838
        %1860 = vmatprep.subr.mxu0 0.0
        %1861 = vmatpush1.msra.mxu0 %v1839
        %1862 = vmatprep.subr.mxu0 0.0
        %1863 = vmatpush1.msra.mxu0 %v1840
        %1864 = vmatprep.subr.mxu0 0.0
        %1865 = vmatpush1.msra.mxu0 %v1841
        %1866 = vmatprep.subr.mxu0 0.0
        %1867 = vmatpush1.msra.mxu0 %v1842
        %1868 = vmatprep.subr.mxu0 0.0
        %1869 = vmatpush1.msra.mxu0 %v1843
        %1870 = vmatprep.subr.mxu0 0.0
        %1871 = vmatpush1.msra.mxu0 %v1844
        %1872 = vmatprep.subr.mxu0 0.0
        %1873 = vmatpush1.msra.mxu0 %v1845
        %1874 = vmatprep.subr.mxu0 0.0
        %1875 = vmatpush1.msra.mxu0 %v1846
        %1876 = vmatprep.subr.mxu0 0.0
        %1877 = vmatpush1.msra.mxu0 %v1847
        %1878 = vmatprep.subr.mxu0 0.0
        %1879 = vmatpush1.msra.mxu0 %v1848
        %1880 = vmatprep.subr.mxu0 0.0
        %1881 = vmatpush1.msra.mxu0 %v1849
        %1882 = vmatprep.subr.mxu0 0.0
        %1883 = vmatpush1.msra.mxu0 0.0
        %1884 = vmatprep.subr.mxu0 0.0
        %1885 = vmatpush1.msra.mxu0 0.0
        %1886 = vmatprep.subr.mxu0 0.0
        %1887 = vmatpush1.msra.mxu0 0.0
        %1888 = vmatprep.subr.mxu0 0.0
        %1889 = vmatpush1.msra.mxu0 0.0
        %1890 = vmatprep.subr.mxu0 0.0
        %1891 = vmatpush1.msra.mxu0 0.0
        %1892 = vmatprep.subr.mxu0 0.0
        %1893 = vmatpush1.msra.mxu0 0.0
        %1894 = vmatprep.subr.mxu0 0.0
        %1895 = vmatpush1.msra.mxu0 0.0
        %1896 = vmatprep.subr.mxu0 0.0
        %1897 = vmatpush1.msra.mxu0 0.0
        %1898 = vmatprep.subr.mxu0 0.0
        %1899 = vmatpush1.msra.mxu0 0.0
        %1900 = vmatprep.subr.mxu0 0.0
        %1901 = vmatpush1.msra.mxu0 0.0
        %1902 = vmatprep.subr.mxu0 0.0
        %1903 = vmatpush1.msra.mxu0 0.0
        %1904 = vmatprep.subr.mxu0 0.0
        %1905 = vmatpush1.msra.mxu0 0.0
        %1906 = vmatprep.subr.mxu0 0.0
        %1907 = vmatpush1.msra.mxu0 0.0
        %1908 = vmatprep.subr.mxu0 0.0
        %1909 = vmatpush1.msra.mxu0 0.0
        %1910 = vmatprep.subr.mxu0 0.0
        %1911 = vmatpush1.msra.mxu0 0.0
        %1912 = vmatprep.subr.mxu0 0.0
        %1913 = vmatpush1.msra.mxu0 0.0
        %1914 = vmatprep.mubr.f32.mxu0 0.0
        %1915 = vmatmul.mubr.f32.gmra.mrb[0].mxu0 %v1360
        %v1916 = vpop.f32.mrb[0].mxu0
        %v1917 = vadd.f32 0.0, %v1916
        %v1918 = vpop.f32.mrb[0].mxu0
        %1919 = vmatprep.mubr.f32.mxu0 0.0
        %1920 = vmatmul.mubr.f32.gmra.mrb[0].mxu0 %v1365
        %v1921 = vpop.f32.mrb[0].mxu0
        %v1922 = vadd.f32 0.0, %v1921
        %v1923 = vpop.f32.mrb[0].mxu0
        %1924 = vmatprep.mubr.f32.mxu0 0.0
        %1925 = vmatmul.mubr.f32.gmra.mrb[0].mxu0 %v1370
        %v1926 = vpop.f32.mrb[0].mxu0
        %v1927 = vadd.f32 0.0, %v1926
        %v1928 = vpop.f32.mrb[0].mxu0
        %1929 = vmatprep.mubr.f32.mxu0 0.0
        %1930 = vmatmul.mubr.f32.gmra.mrb[0].mxu0 %v1375
        %v1931 = vpop.f32.mrb[0].mxu0
        %v1932 = vadd.f32 0.0, %v1931
        %v1933 = vpop.f32.mrb[0].mxu0
        %1934 = vmatprep.mubr.f32.mxu0 0.0
        %1935 = vmatmul.mubr.f32.gmra.mrb[0].mxu0 %v1380
        %v1936 = vpop.f32.mrb[0].mxu0
        %v1937 = vadd.f32 0.0, %v1936
        %v1938 = vpop.f32.mrb[0].mxu0
        %1939 = vmatprep.mubr.f32.mxu0 0.0
        %1940 = vmatmul.mubr.f32.gmra.mrb[0].mxu0 %v1385
        %v1941 = vpop.f32.mrb[0].mxu0
        %v1942 = vadd.f32 0.0, %v1941
        %v1943 = vpop.f32.mrb[0].mxu0
        %1944 = vmatprep.mubr.f32.mxu0 0.0
        %1945 = vmatmul.mubr.f32.gmra.mrb[0].mxu0 %v1390
        %v1946 = vpop.f32.mrb[0].mxu0
        %v1947 = vadd.f32 0.0, %v1946
        %v1948 = vpop.f32.mrb[0].mxu0
        %1949 = vmatprep.mubr.f32.mxu0 0.0
        %1950 = vmatmul.mubr.f32.gmra.mrb[0].mxu0 %v1395
        %v1951 = vpop.f32.mrb[0].mxu0
        %v1952 = vadd.f32 0.0, %v1951
        %v1953 = vpop.f32.mrb[0].mxu0
        %1954 = vmatprep.mubr.f32.mxu0 0.0
        %1955 = vmatmul.mubr.f32.gmra.mrb[0].mxu0 %v1400
        %v1956 = vpop.f32.mrb[0].mxu0
        %v1957 = vadd.f32 0.0, %v1956
        %v1958 = vpop.f32.mrb[0].mxu0
        %1959 = vmatprep.mubr.f32.mxu0 0.0
        %1960 = vmatmul.mubr.f32.gmra.mrb[0].mxu0 %v1405
        %v1961 = vpop.f32.mrb[0].mxu0
        %v1962 = vadd.f32 0.0, %v1961
        %v1963 = vpop.f32.mrb[0].mxu0
        %1964 = vmatprep.mubr.f32.mxu0 0.0
        %1965 = vmatmul.mubr.f32.gmra.mrb[0].mxu0 %v1410
        %v1966 = vpop.f32.mrb[0].mxu0
        %v1967 = vadd.f32 0.0, %v1966
        %v1968 = vpop.f32.mrb[0].mxu0
        %1969 = vmatprep.mubr.f32.mxu0 0.0
        %1970 = vmatmul.mubr.f32.gmra.mrb[0].mxu0 %v1415
        %v1971 = vpop.f32.mrb[0].mxu0
        %v1972 = vadd.f32 0.0, %v1971
        %v1973 = vpop.f32.mrb[0].mxu0
        %1974 = vmatprep.mubr.f32.mxu0 0.0
        %1975 = vmatmul.mubr.f32.gmra.mrb[0].mxu0 %v1420
        %v1976 = vpop.f32.mrb[0].mxu0
        %v1977 = vadd.f32 0.0, %v1976
        %v1978 = vpop.f32.mrb[0].mxu0
        %1979 = vmatprep.mubr.f32.mxu0 0.0
        %1980 = vmatmul.mubr.f32.gmra.mrb[0].mxu0 %v1425
        %v1981 = vpop.f32.mrb[0].mxu0
        %v1982 = vadd.f32 0.0, %v1981
        %v1983 = vpop.f32.mrb[0].mxu0
        %1984 = vmatprep.mubr.f32.mxu0 0.0
        %1985 = vmatmul.mubr.f32.gmra.mrb[0].mxu0 %v1430
        %v1986 = vpop.f32.mrb[0].mxu0
        %v1987 = vadd.f32 0.0, %v1986
        %v1988 = vpop.f32.mrb[0].mxu0
        %1989 = vmatprep.mubr.f32.mxu0 0.0
        %1990 = vmatmul.mubr.f32.gmra.mrb[0].mxu0 %v1435
        %v1991 = vpop.f32.mrb[0].mxu0
        %v1992 = vadd.f32 0.0, %v1991
        %v1993 = vpop.f32.mrb[0].mxu0
        %1994 = vdwg.mxu0
        %v1995 = vmul.f32 %v1782, %v1917
        %v1996 = vmul.f32 %v1783, %v1922
        %v1997 = vmul.f32 %v1784, %v1927
        %v1998 = vmul.f32 %v1785, %v1932
        %v1999 = vmul.f32 %v1786, %v1937
        %v2000 = vmul.f32 %v1787, %v1942
        %v2001 = vmul.f32 %v1788, %v1947
        %v2002 = vmul.f32 %v1789, %v1952
        %v2003 = vmul.f32 %v1790, %v1957
        %v2004 = vmul.f32 %v1791, %v1962
        %v2005 = vmul.f32 %v1792, %v1967
        %v2006 = vmul.f32 %v1793, %v1972
        %v2007 = vmul.f32 %v1794, %v1977
        %v2008 = vmul.f32 %v1795, %v1982
        %v2009 = vmul.f32 %v1796, %v1987
        %v2010 = vmul.f32 %v1797, %v1992
        %v2011 = vadd.f32 %v1995, %v1996
        %v2012 = vadd.f32 %v2011, %v1997
        %v2013 = vadd.f32 %v2012, %v1998
        %v2014 = vadd.f32 %v2013, %v1999
        %v2015 = vadd.f32 %v2014, %v2000
        %v2016 = vadd.f32 %v2015, %v2001
        %v2017 = vadd.f32 %v2016, %v2002
        %v2018 = vadd.f32 %v2017, %v2003
        %v2019 = vadd.f32 %v2018, %v2004
        %v2020 = vadd.f32 %v2019, %v2005
        %v2021 = vadd.f32 %v2020, %v2006
        %v2022 = vadd.f32 %v2021, %v2007
        %v2023 = vadd.f32 %v2022, %v2008
        %v2024 = vadd.f32 %v2023, %v2009
        %v2025 = vadd.f32 %v2024, %v2010
        %v2026 = vrot.slane %v2025, 4
        %v2027 = vadd.f32 %v2025, %v2026
        %v2028 = vrot.slane %v2027, 2
        %v2029 = vadd.f32 %v2027, %v2028
        %v2030 = vrot.slane %v2029, 1
        %v2031 = vadd.f32 %v2029, %v2030
        %2032 = vst [vmem:[%s9] sm:$0x1] %v2031
      $region60: #{gat_link_predict.1} parent=51 // pred_fallthru
        _
      // Predicated region
      $region61: #{gat_link_predict.1} parent=51 // pred_check
        %p2033 = pneg %p217
      $region62: #{gat_link_predict.1} parent=51 // pred_check_branch
        %2035 = sbr.rel (%p2033) target = $region64
      $region63: #{gat_link_predict.1} parent=51 // pred_region
        _
      $region64: #{gat_link_predict.1} parent=51 // pred_fallthru
        _
      // Predicated region
      $region65: #{gat_link_predict.1} parent=51 // pred_check
        %p2036 = pneg %p238
      $region66: #{gat_link_predict.1} parent=51 // pred_check_branch
        %2038 = sbr.rel (%p2036) target = $region68
      $region67: #{gat_link_predict.1} parent=51 // pred_region
        _
      $region68: #{gat_link_predict.1} parent=51 // pred_fallthru
        _
      // Predicated region
      $region69: #{gat_link_predict.1} parent=51 // pred_check
        %p2039 = pneg %p217
      $region70: #{gat_link_predict.1} parent=51 // pred_check_branch
        %2041 = sbr.rel (%p2039) target = $region72
      $region71: #{gat_link_predict.1} parent=51 // pred_region
        _
      $region72: #{gat_link_predict.1} parent=51 // pred_fallthru
        _
      // Predicated region
      $region73: #{gat_link_predict.1} parent=51 // pred_check
        %p2042 = pneg %p238
      $region74: #{gat_link_predict.1} parent=51 // pred_check_branch
        %2044 = sbr.rel (%p2042) target = $region76
      $region75: #{gat_link_predict.1} parent=51 // pred_region
        _
      $region76: #{gat_link_predict.1} parent=51 // pred_fallthru
        _
    $region52: #{gat_link_predict.1} parent=5 // pred_fallthru
      _
    %p2045 = scmp.le.s32.totalorder 2, %s16
    // Predicated region
    $region77: #{gat_link_predict.1} parent=5 // pred_check
      %p2046 = pneg %p2045
    $region78: #{gat_link_predict.1} parent=5 // pred_check_branch
      %2048 = sbr.rel (%p2046) target = $region80
    $region79: #{gat_link_predict.1} parent=5 // pred_region
      %s2049 = ssub.s32 %s16, 2
    $region80: #{gat_link_predict.1} parent=5 // pred_fallthru
      _
  $region6: #{gat_link_predict.1} parent=0 // loop_footer
    %s20 = sadd.s32 1, %s16
  $region7: #{gat_link_predict.1} parent=0 // loop_footer_branch
    %15 = sbr.rel target = $region3
  $region8: #{gat_link_predict.1} parent=0 // loop_exit
    _

</llo_original>
